<compile_context>
chip_gen: v6e
topology: v6e:2x2x1
jax: 0.10.0
libtpu: 0.0.40
codegen_flags: <defaults>
</compile_context>

<pallas_src>
import jax
import jax.numpy as jnp
from jax import lax
from jax.experimental import pallas as pl
from jax.experimental.pallas import tpu as pltpu


# ----------------------------- Pallas kernel --------------------------------
def gru_recurrence_kernel(xg_ref, whh_ref, bhn_ref, out_ref, hn_ref, h_scratch):
    """One grid step == TC timesteps of the GRU recurrence for one batch tile.

    Grid: (batch_tiles [parallel], time_chunks [arbitrary]).

    xg_ref   : (TC, TB, 3H) bf16  precomputed x @ W_ih + (b_ih + [b_hr, b_hz, 0])
    whh_ref  : (H, 3H)      bf16  packed hidden->hidden weights, gate order [r,z,n]
    bhn_ref  : (1, H)       f32   hidden bias of n gate (must stay inside r*(...))
    out_ref  : (TC, TB, H)  bf16  per-timestep hidden states (halved writeback)
    hn_ref   : (TB, H)      f32   final hidden state (exact, f32)
    h_scratch: (TB, H)      f32   recurrent state, persistent across time chunks
    """
    c = pl.program_id(1)          # time-chunk index (inner, sequential axis)

    @pl.when(c == 0)
    def _():
        h_scratch[...] = jnp.zeros_like(h_scratch)

    tc = xg_ref.shape[0]
    H = h_scratch.shape[-1]
    whh = whh_ref[...]            # resident weights, hoisted out of the time loop
    # Hoisted: JAX does not CSE broadcast_in_dim; with unroll=True an in-loop
    # broadcast would be re-emitted TC times per grid step.
    b_hn = jnp.broadcast_to(bhn_ref[...], h_scratch.shape)      # (TB, H)

    def step(t, h):
        xg = xg_ref[t].astype(jnp.float32)                      # (TB, 3H) bf16->f32
        # Single packed MXU matmul per step: bf16 operands, f32 accumulation.
        hg = jnp.dot(h.astype(jnp.bfloat16), whh,
                     preferred_element_type=jnp.float32)        # (TB, 3H)
        # PyTorch GRU, gate order [r, z, n]; r/z biases pre-folded into xg.
        # Gate math stays f32 (v5e has no bf16 VPU/EUP); sigmoid/tanh land on
        # the EUP slot and overlap the MXU.
        r = jax.nn.sigmoid(xg[:, 0:H] + hg[:, 0:H])
        z = jax.nn.sigmoid(xg[:, H:2 * H] + hg[:, H:2 * H])
        n = jnp.tanh(xg[:, 2 * H:] + r * (hg[:, 2 * H:] + b_hn))
        h_new = n + z * (h - n)                                 # == (1-z)*n + z*h
        out_ref[t] = h_new.astype(out_ref.dtype)
        return h_new

    h_final = lax.fori_loop(0, tc, step, h_scratch[...], unroll=True)
    h_scratch[...] = h_final
    # Resident (TB, H) output block: the last write (final time chunk) is what
    # gets flushed to HBM -> exact f32 final hidden state, no padded steps.
    hn_ref[...] = h_final


def gru_recurrence(xg_tbf, w_hh, b_hn, *, tc=8, tb=256):
    """xg_tbf: (S, B, 3H) bf16 time-major precomputed input gates.

    Returns (outputs (S, B, H) bf16, h_n (B, H) f32)."""
    S, B, H3 = xg_tbf.shape
    H = H3 // 3

    # Time-chunk size: largest divisor of S that is <= tc. Avoids jnp.pad of
    # the largest streamed tensor (a full extra HBM round trip) and wasted
    # recurrence steps on zero input.
    tc = max(1, min(tc, S))
    while S % tc:
        tc -= 1
    n_chunks = S // tc

    # Batch tile: sequences are independent in batch, so a leading "parallel"
    # grid axis lets Mosaic shard batch tiles across TensorCores (2 on v7x) and
    # caps per-core VMEM at large B. Must divide B. For best MXU utilization
    # the caller should provide B >= 128 (ideally 256) at production sizes.
    tb = max(1, min(tb, B))
    while B % tb:
        tb -= 1
    n_btiles = B // tb

    outputs, h_n = pl.pallas_call(
        gru_recurrence_kernel,
        out_shape=(
            jax.ShapeDtypeStruct((S, B, H), jnp.bfloat16),
            jax.ShapeDtypeStruct((B, H), jnp.float32),
        ),
        grid_spec=pltpu.PrefetchScalarGridSpec(
            num_scalar_prefetch=0,
            grid=(n_btiles, n_chunks),
            in_specs=[
                # Streamed bf16 input-gate chunk (double-buffered by default).
                pl.BlockSpec((tc, tb, H3), lambda b, c: (c, b, 0)),
                # Resident constants: single-buffered (no need to double-buffer
                # a constant block; saves H*3H*2 bytes of VMEM — matters for
                # H >= 1024 on v7x's 64 MiB VMEM).
                pl.BlockSpec((H, H3), lambda b, c: (0, 0),
                             pipeline_mode=pl.Buffered(1)),
                pl.BlockSpec((1, H), lambda b, c: (0, 0),
                             pipeline_mode=pl.Buffered(1)),
            ],
            out_specs=(
                pl.BlockSpec((tc, tb, H), lambda b, c: (c, b, 0)),
                pl.BlockSpec((tb, H), lambda b, c: (b, 0)),
            ),
            scratch_shapes=[pltpu.VMEM((tb, H), jnp.float32)],
        ),
        compiler_params=pltpu.CompilerParams(
            # Time axis is inherently serial; batch tiles are independent.
            dimension_semantics=("parallel", "arbitrary"),
            # Explicit scoped-VMEM budget: above the 16/32 MiB defaults, below
            # v7x's 64 MiB physical VMEM.
            vmem_limit_bytes=48 * 1024 * 1024,
        ),
    )(xg_tbf, w_hh, b_hn)
    return outputs, h_n


# ------------------------------ Encoder wrapper ------------------------------
class EncoderPallas:
    """Pallas port of Encoder(vocab, emb, hidden, num_layers=1, cell_type='gru',
    bidirectional=False). Dropout is identity (eval mode).

    Weight layout: packed & transposed w.r.t. PyTorch — W_ih: (E, 3H),
    W_hh: (H, 3H), gate order [r, z, n] matching torch.nn.GRU."""

    def __init__(self, vocab_size, emb_dim, hidden_size, key):
        k_emb, k_wih, k_whh, k_bih, k_bhh = jax.random.split(key, 5)
        H = hidden_size
        scale = 1.0 / jnp.sqrt(hidden_size)
        self.hidden_size = H
        self.emb_table = jax.random.normal(k_emb, (vocab_size, emb_dim), jnp.float32)
        # bf16 weights: half the resident VMEM / HBM DMA, native MXU dtype.
        self.w_ih = jax.random.uniform(k_wih, (emb_dim, 3 * H),
                                       jnp.float32, -scale, scale).astype(jnp.bfloat16)
        self.w_hh = jax.random.uniform(k_whh, (H, 3 * H),
                                       jnp.float32, -scale, scale).astype(jnp.bfloat16)
        self.b_ih = jax.random.uniform(k_bih, (3 * H,), jnp.float32, -scale, scale)
        self.b_hh = jax.random.uniform(k_bhh, (3 * H,), jnp.float32, -scale, scale)
        # Folded bias for the precomputed input projection:
        #   r, z gates: b_i* + b_h* summed up front; n gate keeps only b_in here
        #   (b_hn must remain inside r * (W_hn h + b_hn)).
        self.b_x = self.b_ih + jnp.concatenate(
            [self.b_hh[:2 * H], jnp.zeros((H,), jnp.float32)])
        self.b_hn = self.b_hh[2 * H:].reshape(1, H)

    def __call__(self, x):
        """x: (batch, src_len) int32 token ids.
        returns: enc_outputs (batch, src_len, hidden) f32, h_n (1, batch, hidden) f32."""
        B, S = x.shape
        H = self.hidden_size
        # Embedding gathered directly in time-major order (only the tiny int32 id
        # matrix is transposed, not the embedded float tensor). Dropout = identity.
        # TODO(synk): training-mode dropout (Bernoulli mask via pltpu PRNG) not wired in.
        emb_tbf = jnp.take(self.emb_table, x.T, axis=0)          # (S, B, E)
        E = emb_tbf.shape[-1]
        # Input projection hoisted out of the recurrence: one big GEMM over S*B
        # rows. Stored bf16: halves the dominant HBM stream into the kernel
        # (arithmetic intensity ~H/2 -> ~H flops/byte).
        xg = (jnp.dot(emb_tbf.reshape(S * B, E).astype(jnp.bfloat16), self.w_ih,
                      preferred_element_type=jnp.float32).reshape(S, B, 3 * H)
              + self.b_x).astype(jnp.bfloat16)                  # (S, B, 3H) bf16
        outputs_tbf, hn = gru_recurrence(xg, self.w_hh, self.b_hn)
        # Kernel stores time-major bf16 (lane-dense stores); the batch-first
        # transpose reads bf16 (half the bytes) and upcasts to f32 to preserve
        # the module's f32 output dtype. h_n is the exact f32 kernel state.
        enc_outputs = jnp.transpose(outputs_tbf, (1, 0, 2)).astype(jnp.float32)
        h_n = hn[None]                                           # (1, B, H) f32
        return enc_outputs, h_n


# ----------------------------- reference checks ------------------------------
def gru_reference_policy(emb_tbf, w_ih, w_hh, b_ih, b_hh):
    """Pure-JAX GRU mirroring the kernel's exact precision policy (bf16 MXU
    operands + f32 accumulation, bf16-stored input gates, f32 recurrent state,
    bf16 per-step outputs). Tight check of kernel structure/indexing."""
    S, B, E = emb_tbf.shape
    H = w_hh.shape[0]
    b_x = b_ih + jnp.concatenate([b_hh[:2 * H], jnp.zeros((H,), jnp.float32)])
    b_hn = b_hh[2 * H:]
    h = jnp.zeros((B, H), jnp.float32)
    outs = []
    for t in range(S):
        gi = (jnp.dot(emb_tbf[t].astype(jnp.bfloat16), w_ih,
                      preferred_element_type=jnp.float32) + b_x
              ).astype(jnp.bfloat16).astype(jnp.float32)
        gh = jnp.dot(h.astype(jnp.bfloat16), w_hh,
                     preferred_element_type=jnp.float32)
        r = jax.nn.sigmoid(gi[:, :H] + gh[:, :H])
        z = jax.nn.sigmoid(gi[:, H:2 * H] + gh[:, H:2 * H])
        n = jnp.tanh(gi[:, 2 * H:] + r * (gh[:, 2 * H:] + b_hn))
        h = n + z * (h - n)
        outs.append(h.astype(jnp.bfloat16))
    return jnp.stack(outs, 0), h[None]


def gru_reference_f32(emb_tbf, w_ih, w_hh, b_ih, b_hh):
    """Canonical full-f32 torch.nn.GRU math — loose bound on bf16-policy drift."""
    S, B, E = emb_tbf.shape
    H = w_hh.shape[0]
    h = jnp.zeros((B, H), jnp.float32)
    outs = []
    for t in range(S):
        gi = jnp.dot(emb_tbf[t], w_ih) + b_ih
        gh = jnp.dot(h, w_hh) + b_hh
        r = jax.nn.sigmoid(gi[:, :H] + gh[:, :H])
        z = jax.nn.sigmoid(gi[:, H:2 * H] + gh[:, H:2 * H])
        n = jnp.tanh(gi[:, 2 * H:] + r * gh[:, 2 * H:])
        h = (1.0 - z) * n + z * h
        outs.append(h)
    return jnp.stack(outs, 0), h[None]


if __name__ == "__main__":
    vocab_size, emb_dim, hidden_size = 32, 16, 32
    batch, src_len = 2, 8

    key = jax.random.PRNGKey(0)
    k_params, k_tokens = jax.random.split(key)

    enc = EncoderPallas(vocab_size, emb_dim, hidden_size, k_params)
    x = jax.random.randint(k_tokens, (batch, src_len), 0, vocab_size, jnp.int32)

    enc_outputs, h_n = enc(x)
    jax.block_until_ready((enc_outputs, h_n))

    assert enc_outputs.shape == (batch, src_len, hidden_size)
    assert enc_outputs.dtype == jnp.float32
    assert h_n.shape == (1, batch, hidden_size)

    emb_tbf = jnp.take(enc.emb_table, x.T, axis=0)

    # Tight check vs the precision-policy-matched reference.
    ref_out_tbf, ref_hn = gru_reference_policy(emb_tbf, enc.w_ih, enc.w_hh,
                                               enc.b_ih, enc.b_hh)
    ref_out = jnp.transpose(ref_out_tbf, (1, 0, 2)).astype(jnp.float32)
    assert jnp.allclose(enc_outputs, ref_out, atol=1e-3, rtol=1e-3), \
        float(jnp.max(jnp.abs(enc_outputs - ref_out)))
    assert jnp.allclose(h_n, ref_hn, atol=1e-3, rtol=1e-3), \
        float(jnp.max(jnp.abs(h_n - ref_hn)))

    # Loose check vs canonical full-f32 math: bounds the drift introduced by
    # the bf16 xg / bf16 output storage policy.
    f32_out_tbf, f32_hn = gru_reference_f32(
        emb_tbf, enc.w_ih.astype(jnp.float32), enc.w_hh.astype(jnp.float32),
        enc.b_ih, enc.b_hh)
    f32_out = jnp.transpose(f32_out_tbf, (1, 0, 2))
    assert jnp.allclose(enc_outputs, f32_out, atol=6e-2, rtol=6e-2), \
        float(jnp.max(jnp.abs(enc_outputs - f32_out)))
    assert jnp.allclose(h_n, f32_hn, atol=6e-2, rtol=6e-2)

    print("KERNEL_OK")
</pallas_src>

<mosaic_0001>
module attributes {stable_mosaic.version = 11 : i64} {
  func.func @gru_recurrence_kernel(%arg0: i32, %arg1: i32, %arg2: memref<8x2x96xbf16, #tpu.memory_space<vmem>>, %arg3: memref<32x96xbf16, #tpu.memory_space<vmem>>, %arg4: memref<1x32xf32, #tpu.memory_space<vmem>>, %arg5: memref<8x2x32xbf16, #tpu.memory_space<vmem>>, %arg6: memref<2x32xf32, #tpu.memory_space<vmem>>, %arg7: memref<2x32xf32, #tpu.memory_space<vmem>>) attributes {dimension_semantics = [#tpu.dimension_semantics<parallel>, #tpu.dimension_semantics<arbitrary>], iteration_bounds = array<i64: 1, 1>, scalar_prefetch = 0 : i64, scratch_operands = 1 : i64, tpu.core_type = #tpu.core_type<tc>, window_params = [{transform_indices = @transform_0, window_bounds = array<i64: 8, 2, 96>}, {pipeline_mode = #tpu.pipeline_mode<synchronous>, transform_indices = @transform_1, window_bounds = array<i64: 32, 96>}, {pipeline_mode = #tpu.pipeline_mode<synchronous>, transform_indices = @transform_2, window_bounds = array<i64: 1, 32>}, {transform_indices = @transform_3, window_bounds = array<i64: 8, 2, 32>}, {transform_indices = @transform_4, window_bounds = array<i64: 2, 32>}]} {
    %c0_i32 = arith.constant 0 : i32
    %0 = arith.cmpi eq, %arg1, %c0_i32 : i32
    %1 = arith.extui %0 : i1 to i32
    %c0_i32_0 = arith.constant 0 : i32
    %2 = arith.cmpi ne, %1, %c0_i32_0 : i32
    scf.if %2 {
      %cst_66 = arith.constant 0.000000e+00 : f32
      %298 = vector.broadcast %cst_66 : f32 to vector<2x32xf32>
      %c0_67 = arith.constant 0 : index
      %c0_68 = arith.constant 0 : index
      %299 = vector.load %arg7[%c0_67, %c0_68] : memref<2x32xf32, #tpu.memory_space<vmem>>, vector<2x32xf32>
      tpu.vector_store %arg7[%c0_67, %c0_68], %298 {strides = array<i32>} : memref<2x32xf32, #tpu.memory_space<vmem>>, vector<2x32xf32>,
    } else {
    }
    %c0 = arith.constant 0 : index
    %c0_1 = arith.constant 0 : index
    %3 = vector.load %arg3[%c0, %c0_1] : memref<32x96xbf16, #tpu.memory_space<vmem>>, vector<32x96xbf16>
    %c0_2 = arith.constant 0 : index
    %c0_3 = arith.constant 0 : index
    %4 = vector.load %arg4[%c0_2, %c0_3] : memref<1x32xf32, #tpu.memory_space<vmem>>, vector<1x32xf32>
    %5 = vector.shape_cast %4 : vector<1x32xf32> to vector<1x32xf32>
    %6 = vector.broadcast %5 : vector<1x32xf32> to vector<2x32xf32>
    %c0_4 = arith.constant 0 : index
    %c0_5 = arith.constant 0 : index
    %7 = vector.load %arg7[%c0_4, %c0_5] : memref<2x32xf32, #tpu.memory_space<vmem>>, vector<2x32xf32>
    %c0_i32_6 = arith.constant 0 : i32
    %8 = arith.index_cast %c0_i32_6 : i32 to index
    %c0_7 = arith.constant 0 : index
    %c0_8 = arith.constant 0 : index
    %9 = vector.load %arg2[%8, %c0_7, %c0_8] : memref<8x2x96xbf16, #tpu.memory_space<vmem>>, vector<1x2x96xbf16>
    %10 = vector.shape_cast %9 : vector<1x2x96xbf16> to vector<2x96xbf16>
    %11 = arith.extf %10 : vector<2x96xbf16> to vector<2x96xf32>
    %12 = arith.truncf %7 : vector<2x32xf32> to vector<2x32xbf16>
    %cst = arith.constant dense<0.000000e+00> : vector<2x96xf32>
    %13 = tpu.matmul %12, %3, %cst {dimension_numbers = #tpu.dot_dimension_numbers<[1], [0], [0], [1], [0, 0, 1, 1], [], []>} : vector<2x32xbf16>, vector<32x96xbf16>, vector<2x96xf32> -> vector<2x96xf32>
    %14 = vector.extract_strided_slice %11 {offsets = [0, 0], sizes = [2, 32], strides = [1, 1]} : vector<2x96xf32> to vector<2x32xf32>
    %15 = vector.extract_strided_slice %13 {offsets = [0, 0], sizes = [2, 32], strides = [1, 1]} : vector<2x96xf32> to vector<2x32xf32>
    %16 = arith.addf %14, %15 : vector<2x32xf32>
    %17 = arith.negf %16 : vector<2x32xf32>
    %18 = math.exp %17 : vector<2x32xf32>
    %cst_9 = arith.constant 1.000000e+00 : f32
    %19 = vector.broadcast %cst_9 : f32 to vector<2x32xf32>
    %20 = arith.addf %19, %18 : vector<2x32xf32>
    %21 = arith.divf %19, %20 : vector<2x32xf32>
    %22 = vector.extract_strided_slice %11 {offsets = [0, 32], sizes = [2, 32], strides = [1, 1]} : vector<2x96xf32> to vector<2x32xf32>
    %23 = vector.extract_strided_slice %13 {offsets = [0, 32], sizes = [2, 32], strides = [1, 1]} : vector<2x96xf32> to vector<2x32xf32>
    %24 = arith.addf %22, %23 : vector<2x32xf32>
    %25 = arith.negf %24 : vector<2x32xf32>
    %26 = math.exp %25 : vector<2x32xf32>
    %cst_10 = arith.constant 1.000000e+00 : f32
    %27 = vector.broadcast %cst_10 : f32 to vector<2x32xf32>
    %28 = arith.addf %27, %26 : vector<2x32xf32>
    %29 = arith.divf %27, %28 : vector<2x32xf32>
    %30 = vector.extract_strided_slice %11 {offsets = [0, 64], sizes = [2, 32], strides = [1, 1]} : vector<2x96xf32> to vector<2x32xf32>
    %31 = vector.extract_strided_slice %13 {offsets = [0, 64], sizes = [2, 32], strides = [1, 1]} : vector<2x96xf32> to vector<2x32xf32>
    %32 = arith.addf %31, %6 : vector<2x32xf32>
    %33 = arith.mulf %21, %32 : vector<2x32xf32>
    %34 = arith.addf %30, %33 : vector<2x32xf32>
    %35 = math.tanh %34 : vector<2x32xf32>
    %36 = arith.subf %7, %35 : vector<2x32xf32>
    %37 = arith.mulf %29, %36 : vector<2x32xf32>
    %38 = arith.addf %35, %37 : vector<2x32xf32>
    %39 = arith.truncf %38 : vector<2x32xf32> to vector<2x32xbf16>
    %40 = arith.index_cast %c0_i32_6 : i32 to index
    %c0_11 = arith.constant 0 : index
    %c0_12 = arith.constant 0 : index
    %41 = vector.load %arg5[%40, %c0_11, %c0_12] : memref<8x2x32xbf16, #tpu.memory_space<vmem>>, vector<1x2x32xbf16>
    %42 = vector.shape_cast %41 : vector<1x2x32xbf16> to vector<2x32xbf16>
    %43 = vector.shape_cast %39 : vector<2x32xbf16> to vector<1x2x32xbf16>
    tpu.vector_store %arg5[%40, %c0_11, %c0_12], %43 {strides = array<i32>} : memref<8x2x32xbf16, #tpu.memory_space<vmem>>, vector<1x2x32xbf16>,
    %c1_i32 = arith.constant 1 : i32
    %44 = arith.index_cast %c1_i32 : i32 to index
    %c0_13 = arith.constant 0 : index
    %c0_14 = arith.constant 0 : index
    %45 = vector.load %arg2[%44, %c0_13, %c0_14] : memref<8x2x96xbf16, #tpu.memory_space<vmem>>, vector<1x2x96xbf16>
    %46 = vector.shape_cast %45 : vector<1x2x96xbf16> to vector<2x96xbf16>
    %47 = arith.extf %46 : vector<2x96xbf16> to vector<2x96xf32>
    %48 = arith.truncf %38 : vector<2x32xf32> to vector<2x32xbf16>
    %cst_15 = arith.constant dense<0.000000e+00> : vector<2x96xf32>
    %49 = tpu.matmul %48, %3, %cst_15 {dimension_numbers = #tpu.dot_dimension_numbers<[1], [0], [0], [1], [0, 0, 1, 1], [], []>} : vector<2x32xbf16>, vector<32x96xbf16>, vector<2x96xf32> -> vector<2x96xf32>
    %50 = vector.extract_strided_slice %47 {offsets = [0, 0], sizes = [2, 32], strides = [1, 1]} : vector<2x96xf32> to vector<2x32xf32>
    %51 = vector.extract_strided_slice %49 {offsets = [0, 0], sizes = [2, 32], strides = [1, 1]} : vector<2x96xf32> to vector<2x32xf32>
    %52 = arith.addf %50, %51 : vector<2x32xf32>
    %53 = arith.negf %52 : vector<2x32xf32>
    %54 = math.exp %53 : vector<2x32xf32>
    %cst_16 = arith.constant 1.000000e+00 : f32
    %55 = vector.broadcast %cst_16 : f32 to vector<2x32xf32>
    %56 = arith.addf %55, %54 : vector<2x32xf32>
    %57 = arith.divf %55, %56 : vector<2x32xf32>
    %58 = vector.extract_strided_slice %47 {offsets = [0, 32], sizes = [2, 32], strides = [1, 1]} : vector<2x96xf32> to vector<2x32xf32>
    %59 = vector.extract_strided_slice %49 {offsets = [0, 32], sizes = [2, 32], strides = [1, 1]} : vector<2x96xf32> to vector<2x32xf32>
    %60 = arith.addf %58, %59 : vector<2x32xf32>
    %61 = arith.negf %60 : vector<2x32xf32>
    %62 = math.exp %61 : vector<2x32xf32>
    %cst_17 = arith.constant 1.000000e+00 : f32
    %63 = vector.broadcast %cst_17 : f32 to vector<2x32xf32>
    %64 = arith.addf %63, %62 : vector<2x32xf32>
    %65 = arith.divf %63, %64 : vector<2x32xf32>
    %66 = vector.extract_strided_slice %47 {offsets = [0, 64], sizes = [2, 32], strides = [1, 1]} : vector<2x96xf32> to vector<2x32xf32>
    %67 = vector.extract_strided_slice %49 {offsets = [0, 64], sizes = [2, 32], strides = [1, 1]} : vector<2x96xf32> to vector<2x32xf32>
    %68 = arith.addf %67, %6 : vector<2x32xf32>
    %69 = arith.mulf %57, %68 : vector<2x32xf32>
    %70 = arith.addf %66, %69 : vector<2x32xf32>
    %71 = math.tanh %70 : vector<2x32xf32>
    %72 = arith.subf %38, %71 : vector<2x32xf32>
    %73 = arith.mulf %65, %72 : vector<2x32xf32>
    %74 = arith.addf %71, %73 : vector<2x32xf32>
    %75 = arith.truncf %74 : vector<2x32xf32> to vector<2x32xbf16>
    %76 = arith.index_cast %c1_i32 : i32 to index
    %c0_18 = arith.constant 0 : index
    %c0_19 = arith.constant 0 : index
    %77 = vector.load %arg5[%76, %c0_18, %c0_19] : memref<8x2x32xbf16, #tpu.memory_space<vmem>>, vector<1x2x32xbf16>
    %78 = vector.shape_cast %77 : vector<1x2x32xbf16> to vector<2x32xbf16>
    %79 = vector.shape_cast %75 : vector<2x32xbf16> to vector<1x2x32xbf16>
    tpu.vector_store %arg5[%76, %c0_18, %c0_19], %79 {strides = array<i32>} : memref<8x2x32xbf16, #tpu.memory_space<vmem>>, vector<1x2x32xbf16>,
    %c2_i32 = arith.constant 2 : i32
    %80 = arith.index_cast %c2_i32 : i32 to index
    %c0_20 = arith.constant 0 : index
    %c0_21 = arith.constant 0 : index
    %81 = vector.load %arg2[%80, %c0_20, %c0_21] : memref<8x2x96xbf16, #tpu.memory_space<vmem>>, vector<1x2x96xbf16>
    %82 = vector.shape_cast %81 : vector<1x2x96xbf16> to vector<2x96xbf16>
    %83 = arith.extf %82 : vector<2x96xbf16> to vector<2x96xf32>
    %84 = arith.truncf %74 : vector<2x32xf32> to vector<2x32xbf16>
    %cst_22 = arith.constant dense<0.000000e+00> : vector<2x96xf32>
    %85 = tpu.matmul %84, %3, %cst_22 {dimension_numbers = #tpu.dot_dimension_numbers<[1], [0], [0], [1], [0, 0, 1, 1], [], []>} : vector<2x32xbf16>, vector<32x96xbf16>, vector<2x96xf32> -> vector<2x96xf32>
    %86 = vector.extract_strided_slice %83 {offsets = [0, 0], sizes = [2, 32], strides = [1, 1]} : vector<2x96xf32> to vector<2x32xf32>
    %87 = vector.extract_strided_slice %85 {offsets = [0, 0], sizes = [2, 32], strides = [1, 1]} : vector<2x96xf32> to vector<2x32xf32>
    %88 = arith.addf %86, %87 : vector<2x32xf32>
    %89 = arith.negf %88 : vector<2x32xf32>
    %90 = math.exp %89 : vector<2x32xf32>
    %cst_23 = arith.constant 1.000000e+00 : f32
    %91 = vector.broadcast %cst_23 : f32 to vector<2x32xf32>
    %92 = arith.addf %91, %90 : vector<2x32xf32>
    %93 = arith.divf %91, %92 : vector<2x32xf32>
    %94 = vector.extract_strided_slice %83 {offsets = [0, 32], sizes = [2, 32], strides = [1, 1]} : vector<2x96xf32> to vector<2x32xf32>
    %95 = vector.extract_strided_slice %85 {offsets = [0, 32], sizes = [2, 32], strides = [1, 1]} : vector<2x96xf32> to vector<2x32xf32>
    %96 = arith.addf %94, %95 : vector<2x32xf32>
    %97 = arith.negf %96 : vector<2x32xf32>
    %98 = math.exp %97 : vector<2x32xf32>
    %cst_24 = arith.constant 1.000000e+00 : f32
    %99 = vector.broadcast %cst_24 : f32 to vector<2x32xf32>
    %100 = arith.addf %99, %98 : vector<2x32xf32>
    %101 = arith.divf %99, %100 : vector<2x32xf32>
    %102 = vector.extract_strided_slice %83 {offsets = [0, 64], sizes = [2, 32], strides = [1, 1]} : vector<2x96xf32> to vector<2x32xf32>
    %103 = vector.extract_strided_slice %85 {offsets = [0, 64], sizes = [2, 32], strides = [1, 1]} : vector<2x96xf32> to vector<2x32xf32>
    %104 = arith.addf %103, %6 : vector<2x32xf32>
    %105 = arith.mulf %93, %104 : vector<2x32xf32>
    %106 = arith.addf %102, %105 : vector<2x32xf32>
    %107 = math.tanh %106 : vector<2x32xf32>
    %108 = arith.subf %74, %107 : vector<2x32xf32>
    %109 = arith.mulf %101, %108 : vector<2x32xf32>
    %110 = arith.addf %107, %109 : vector<2x32xf32>
    %111 = arith.truncf %110 : vector<2x32xf32> to vector<2x32xbf16>
    %112 = arith.index_cast %c2_i32 : i32 to index
    %c0_25 = arith.constant 0 : index
    %c0_26 = arith.constant 0 : index
    %113 = vector.load %arg5[%112, %c0_25, %c0_26] : memref<8x2x32xbf16, #tpu.memory_space<vmem>>, vector<1x2x32xbf16>
    %114 = vector.shape_cast %113 : vector<1x2x32xbf16> to vector<2x32xbf16>
    %115 = vector.shape_cast %111 : vector<2x32xbf16> to vector<1x2x32xbf16>
    tpu.vector_store %arg5[%112, %c0_25, %c0_26], %115 {strides = array<i32>} : memref<8x2x32xbf16, #tpu.memory_space<vmem>>, vector<1x2x32xbf16>,
    %c3_i32 = arith.constant 3 : i32
    %116 = arith.index_cast %c3_i32 : i32 to index
    %c0_27 = arith.constant 0 : index
    %c0_28 = arith.constant 0 : index
    %117 = vector.load %arg2[%116, %c0_27, %c0_28] : memref<8x2x96xbf16, #tpu.memory_space<vmem>>, vector<1x2x96xbf16>
    %118 = vector.shape_cast %117 : vector<1x2x96xbf16> to vector<2x96xbf16>
    %119 = arith.extf %118 : vector<2x96xbf16> to vector<2x96xf32>
    %120 = arith.truncf %110 : vector<2x32xf32> to vector<2x32xbf16>
    %cst_29 = arith.constant dense<0.000000e+00> : vector<2x96xf32>
    %121 = tpu.matmul %120, %3, %cst_29 {dimension_numbers = #tpu.dot_dimension_numbers<[1], [0], [0], [1], [0, 0, 1, 1], [], []>} : vector<2x32xbf16>, vector<32x96xbf16>, vector<2x96xf32> -> vector<2x96xf32>
    %122 = vector.extract_strided_slice %119 {offsets = [0, 0], sizes = [2, 32], strides = [1, 1]} : vector<2x96xf32> to vector<2x32xf32>
    %123 = vector.extract_strided_slice %121 {offsets = [0, 0], sizes = [2, 32], strides = [1, 1]} : vector<2x96xf32> to vector<2x32xf32>
    %124 = arith.addf %122, %123 : vector<2x32xf32>
    %125 = arith.negf %124 : vector<2x32xf32>
    %126 = math.exp %125 : vector<2x32xf32>
    %cst_30 = arith.constant 1.000000e+00 : f32
    %127 = vector.broadcast %cst_30 : f32 to vector<2x32xf32>
    %128 = arith.addf %127, %126 : vector<2x32xf32>
    %129 = arith.divf %127, %128 : vector<2x32xf32>
    %130 = vector.extract_strided_slice %119 {offsets = [0, 32], sizes = [2, 32], strides = [1, 1]} : vector<2x96xf32> to vector<2x32xf32>
    %131 = vector.extract_strided_slice %121 {offsets = [0, 32], sizes = [2, 32], strides = [1, 1]} : vector<2x96xf32> to vector<2x32xf32>
    %132 = arith.addf %130, %131 : vector<2x32xf32>
    %133 = arith.negf %132 : vector<2x32xf32>
    %134 = math.exp %133 : vector<2x32xf32>
    %cst_31 = arith.constant 1.000000e+00 : f32
    %135 = vector.broadcast %cst_31 : f32 to vector<2x32xf32>
    %136 = arith.addf %135, %134 : vector<2x32xf32>
    %137 = arith.divf %135, %136 : vector<2x32xf32>
    %138 = vector.extract_strided_slice %119 {offsets = [0, 64], sizes = [2, 32], strides = [1, 1]} : vector<2x96xf32> to vector<2x32xf32>
    %139 = vector.extract_strided_slice %121 {offsets = [0, 64], sizes = [2, 32], strides = [1, 1]} : vector<2x96xf32> to vector<2x32xf32>
    %140 = arith.addf %139, %6 : vector<2x32xf32>
    %141 = arith.mulf %129, %140 : vector<2x32xf32>
    %142 = arith.addf %138, %141 : vector<2x32xf32>
    %143 = math.tanh %142 : vector<2x32xf32>
    %144 = arith.subf %110, %143 : vector<2x32xf32>
    %145 = arith.mulf %137, %144 : vector<2x32xf32>
    %146 = arith.addf %143, %145 : vector<2x32xf32>
    %147 = arith.truncf %146 : vector<2x32xf32> to vector<2x32xbf16>
    %148 = arith.index_cast %c3_i32 : i32 to index
    %c0_32 = arith.constant 0 : index
    %c0_33 = arith.constant 0 : index
    %149 = vector.load %arg5[%148, %c0_32, %c0_33] : memref<8x2x32xbf16, #tpu.memory_space<vmem>>, vector<1x2x32xbf16>
    %150 = vector.shape_cast %149 : vector<1x2x32xbf16> to vector<2x32xbf16>
    %151 = vector.shape_cast %147 : vector<2x32xbf16> to vector<1x2x32xbf16>
    tpu.vector_store %arg5[%148, %c0_32, %c0_33], %151 {strides = array<i32>} : memref<8x2x32xbf16, #tpu.memory_space<vmem>>, vector<1x2x32xbf16>,
    %c4_i32 = arith.constant 4 : i32
    %152 = arith.index_cast %c4_i32 : i32 to index
    %c0_34 = arith.constant 0 : index
    %c0_35 = arith.constant 0 : index
    %153 = vector.load %arg2[%152, %c0_34, %c0_35] : memref<8x2x96xbf16, #tpu.memory_space<vmem>>, vector<1x2x96xbf16>
    %154 = vector.shape_cast %153 : vector<1x2x96xbf16> to vector<2x96xbf16>
    %155 = arith.extf %154 : vector<2x96xbf16> to vector<2x96xf32>
    %156 = arith.truncf %146 : vector<2x32xf32> to vector<2x32xbf16>
    %cst_36 = arith.constant dense<0.000000e+00> : vector<2x96xf32>
    %157 = tpu.matmul %156, %3, %cst_36 {dimension_numbers = #tpu.dot_dimension_numbers<[1], [0], [0], [1], [0, 0, 1, 1], [], []>} : vector<2x32xbf16>, vector<32x96xbf16>, vector<2x96xf32> -> vector<2x96xf32>
    %158 = vector.extract_strided_slice %155 {offsets = [0, 0], sizes = [2, 32], strides = [1, 1]} : vector<2x96xf32> to vector<2x32xf32>
    %159 = vector.extract_strided_slice %157 {offsets = [0, 0], sizes = [2, 32], strides = [1, 1]} : vector<2x96xf32> to vector<2x32xf32>
    %160 = arith.addf %158, %159 : vector<2x32xf32>
    %161 = arith.negf %160 : vector<2x32xf32>
    %162 = math.exp %161 : vector<2x32xf32>
    %cst_37 = arith.constant 1.000000e+00 : f32
    %163 = vector.broadcast %cst_37 : f32 to vector<2x32xf32>
    %164 = arith.addf %163, %162 : vector<2x32xf32>
    %165 = arith.divf %163, %164 : vector<2x32xf32>
    %166 = vector.extract_strided_slice %155 {offsets = [0, 32], sizes = [2, 32], strides = [1, 1]} : vector<2x96xf32> to vector<2x32xf32>
    %167 = vector.extract_strided_slice %157 {offsets = [0, 32], sizes = [2, 32], strides = [1, 1]} : vector<2x96xf32> to vector<2x32xf32>
    %168 = arith.addf %166, %167 : vector<2x32xf32>
    %169 = arith.negf %168 : vector<2x32xf32>
    %170 = math.exp %169 : vector<2x32xf32>
    %cst_38 = arith.constant 1.000000e+00 : f32
    %171 = vector.broadcast %cst_38 : f32 to vector<2x32xf32>
    %172 = arith.addf %171, %170 : vector<2x32xf32>
    %173 = arith.divf %171, %172 : vector<2x32xf32>
    %174 = vector.extract_strided_slice %155 {offsets = [0, 64], sizes = [2, 32], strides = [1, 1]} : vector<2x96xf32> to vector<2x32xf32>
    %175 = vector.extract_strided_slice %157 {offsets = [0, 64], sizes = [2, 32], strides = [1, 1]} : vector<2x96xf32> to vector<2x32xf32>
    %176 = arith.addf %175, %6 : vector<2x32xf32>
    %177 = arith.mulf %165, %176 : vector<2x32xf32>
    %178 = arith.addf %174, %177 : vector<2x32xf32>
    %179 = math.tanh %178 : vector<2x32xf32>
    %180 = arith.subf %146, %179 : vector<2x32xf32>
    %181 = arith.mulf %173, %180 : vector<2x32xf32>
    %182 = arith.addf %179, %181 : vector<2x32xf32>
    %183 = arith.truncf %182 : vector<2x32xf32> to vector<2x32xbf16>
    %184 = arith.index_cast %c4_i32 : i32 to index
    %c0_39 = arith.constant 0 : index
    %c0_40 = arith.constant 0 : index
    %185 = vector.load %arg5[%184, %c0_39, %c0_40] : memref<8x2x32xbf16, #tpu.memory_space<vmem>>, vector<1x2x32xbf16>
    %186 = vector.shape_cast %185 : vector<1x2x32xbf16> to vector<2x32xbf16>
    %187 = vector.shape_cast %183 : vector<2x32xbf16> to vector<1x2x32xbf16>
    tpu.vector_store %arg5[%184, %c0_39, %c0_40], %187 {strides = array<i32>} : memref<8x2x32xbf16, #tpu.memory_space<vmem>>, vector<1x2x32xbf16>,
    %c5_i32 = arith.constant 5 : i32
    %188 = arith.index_cast %c5_i32 : i32 to index
    %c0_41 = arith.constant 0 : index
    %c0_42 = arith.constant 0 : index
    %189 = vector.load %arg2[%188, %c0_41, %c0_42] : memref<8x2x96xbf16, #tpu.memory_space<vmem>>, vector<1x2x96xbf16>
    %190 = vector.shape_cast %189 : vector<1x2x96xbf16> to vector<2x96xbf16>
    %191 = arith.extf %190 : vector<2x96xbf16> to vector<2x96xf32>
    %192 = arith.truncf %182 : vector<2x32xf32> to vector<2x32xbf16>
    %cst_43 = arith.constant dense<0.000000e+00> : vector<2x96xf32>
    %193 = tpu.matmul %192, %3, %cst_43 {dimension_numbers = #tpu.dot_dimension_numbers<[1], [0], [0], [1], [0, 0, 1, 1], [], []>} : vector<2x32xbf16>, vector<32x96xbf16>, vector<2x96xf32> -> vector<2x96xf32>
    %194 = vector.extract_strided_slice %191 {offsets = [0, 0], sizes = [2, 32], strides = [1, 1]} : vector<2x96xf32> to vector<2x32xf32>
    %195 = vector.extract_strided_slice %193 {offsets = [0, 0], sizes = [2, 32], strides = [1, 1]} : vector<2x96xf32> to vector<2x32xf32>
    %196 = arith.addf %194, %195 : vector<2x32xf32>
    %197 = arith.negf %196 : vector<2x32xf32>
    %198 = math.exp %197 : vector<2x32xf32>
    %cst_44 = arith.constant 1.000000e+00 : f32
    %199 = vector.broadcast %cst_44 : f32 to vector<2x32xf32>
    %200 = arith.addf %199, %198 : vector<2x32xf32>
    %201 = arith.divf %199, %200 : vector<2x32xf32>
    %202 = vector.extract_strided_slice %191 {offsets = [0, 32], sizes = [2, 32], strides = [1, 1]} : vector<2x96xf32> to vector<2x32xf32>
    %203 = vector.extract_strided_slice %193 {offsets = [0, 32], sizes = [2, 32], strides = [1, 1]} : vector<2x96xf32> to vector<2x32xf32>
    %204 = arith.addf %202, %203 : vector<2x32xf32>
    %205 = arith.negf %204 : vector<2x32xf32>
    %206 = math.exp %205 : vector<2x32xf32>
    %cst_45 = arith.constant 1.000000e+00 : f32
    %207 = vector.broadcast %cst_45 : f32 to vector<2x32xf32>
    %208 = arith.addf %207, %206 : vector<2x32xf32>
    %209 = arith.divf %207, %208 : vector<2x32xf32>
    %210 = vector.extract_strided_slice %191 {offsets = [0, 64], sizes = [2, 32], strides = [1, 1]} : vector<2x96xf32> to vector<2x32xf32>
    %211 = vector.extract_strided_slice %193 {offsets = [0, 64], sizes = [2, 32], strides = [1, 1]} : vector<2x96xf32> to vector<2x32xf32>
    %212 = arith.addf %211, %6 : vector<2x32xf32>
    %213 = arith.mulf %201, %212 : vector<2x32xf32>
    %214 = arith.addf %210, %213 : vector<2x32xf32>
    %215 = math.tanh %214 : vector<2x32xf32>
    %216 = arith.subf %182, %215 : vector<2x32xf32>
    %217 = arith.mulf %209, %216 : vector<2x32xf32>
    %218 = arith.addf %215, %217 : vector<2x32xf32>
    %219 = arith.truncf %218 : vector<2x32xf32> to vector<2x32xbf16>
    %220 = arith.index_cast %c5_i32 : i32 to index
    %c0_46 = arith.constant 0 : index
    %c0_47 = arith.constant 0 : index
    %221 = vector.load %arg5[%220, %c0_46, %c0_47] : memref<8x2x32xbf16, #tpu.memory_space<vmem>>, vector<1x2x32xbf16>
    %222 = vector.shape_cast %221 : vector<1x2x32xbf16> to vector<2x32xbf16>
    %223 = vector.shape_cast %219 : vector<2x32xbf16> to vector<1x2x32xbf16>
    tpu.vector_store %arg5[%220, %c0_46, %c0_47], %223 {strides = array<i32>} : memref<8x2x32xbf16, #tpu.memory_space<vmem>>, vector<1x2x32xbf16>,
    %c6_i32 = arith.constant 6 : i32
    %224 = arith.index_cast %c6_i32 : i32 to index
    %c0_48 = arith.constant 0 : index
    %c0_49 = arith.constant 0 : index
    %225 = vector.load %arg2[%224, %c0_48, %c0_49] : memref<8x2x96xbf16, #tpu.memory_space<vmem>>, vector<1x2x96xbf16>
    %226 = vector.shape_cast %225 : vector<1x2x96xbf16> to vector<2x96xbf16>
    %227 = arith.extf %226 : vector<2x96xbf16> to vector<2x96xf32>
    %228 = arith.truncf %218 : vector<2x32xf32> to vector<2x32xbf16>
    %cst_50 = arith.constant dense<0.000000e+00> : vector<2x96xf32>
    %229 = tpu.matmul %228, %3, %cst_50 {dimension_numbers = #tpu.dot_dimension_numbers<[1], [0], [0], [1], [0, 0, 1, 1], [], []>} : vector<2x32xbf16>, vector<32x96xbf16>, vector<2x96xf32> -> vector<2x96xf32>
    %230 = vector.extract_strided_slice %227 {offsets = [0, 0], sizes = [2, 32], strides = [1, 1]} : vector<2x96xf32> to vector<2x32xf32>
    %231 = vector.extract_strided_slice %229 {offsets = [0, 0], sizes = [2, 32], strides = [1, 1]} : vector<2x96xf32> to vector<2x32xf32>
    %232 = arith.addf %230, %231 : vector<2x32xf32>
    %233 = arith.negf %232 : vector<2x32xf32>
    %234 = math.exp %233 : vector<2x32xf32>
    %cst_51 = arith.constant 1.000000e+00 : f32
    %235 = vector.broadcast %cst_51 : f32 to vector<2x32xf32>
    %236 = arith.addf %235, %234 : vector<2x32xf32>
    %237 = arith.divf %235, %236 : vector<2x32xf32>
    %238 = vector.extract_strided_slice %227 {offsets = [0, 32], sizes = [2, 32], strides = [1, 1]} : vector<2x96xf32> to vector<2x32xf32>
    %239 = vector.extract_strided_slice %229 {offsets = [0, 32], sizes = [2, 32], strides = [1, 1]} : vector<2x96xf32> to vector<2x32xf32>
    %240 = arith.addf %238, %239 : vector<2x32xf32>
    %241 = arith.negf %240 : vector<2x32xf32>
    %242 = math.exp %241 : vector<2x32xf32>
    %cst_52 = arith.constant 1.000000e+00 : f32
    %243 = vector.broadcast %cst_52 : f32 to vector<2x32xf32>
    %244 = arith.addf %243, %242 : vector<2x32xf32>
    %245 = arith.divf %243, %244 : vector<2x32xf32>
    %246 = vector.extract_strided_slice %227 {offsets = [0, 64], sizes = [2, 32], strides = [1, 1]} : vector<2x96xf32> to vector<2x32xf32>
    %247 = vector.extract_strided_slice %229 {offsets = [0, 64], sizes = [2, 32], strides = [1, 1]} : vector<2x96xf32> to vector<2x32xf32>
    %248 = arith.addf %247, %6 : vector<2x32xf32>
    %249 = arith.mulf %237, %248 : vector<2x32xf32>
    %250 = arith.addf %246, %249 : vector<2x32xf32>
    %251 = math.tanh %250 : vector<2x32xf32>
    %252 = arith.subf %218, %251 : vector<2x32xf32>
    %253 = arith.mulf %245, %252 : vector<2x32xf32>
    %254 = arith.addf %251, %253 : vector<2x32xf32>
    %255 = arith.truncf %254 : vector<2x32xf32> to vector<2x32xbf16>
    %256 = arith.index_cast %c6_i32 : i32 to index
    %c0_53 = arith.constant 0 : index
    %c0_54 = arith.constant 0 : index
    %257 = vector.load %arg5[%256, %c0_53, %c0_54] : memref<8x2x32xbf16, #tpu.memory_space<vmem>>, vector<1x2x32xbf16>
    %258 = vector.shape_cast %257 : vector<1x2x32xbf16> to vector<2x32xbf16>
    %259 = vector.shape_cast %255 : vector<2x32xbf16> to vector<1x2x32xbf16>
    tpu.vector_store %arg5[%256, %c0_53, %c0_54], %259 {strides = array<i32>} : memref<8x2x32xbf16, #tpu.memory_space<vmem>>, vector<1x2x32xbf16>,
    %c7_i32 = arith.constant 7 : i32
    %260 = arith.index_cast %c7_i32 : i32 to index
    %c0_55 = arith.constant 0 : index
    %c0_56 = arith.constant 0 : index
    %261 = vector.load %arg2[%260, %c0_55, %c0_56] : memref<8x2x96xbf16, #tpu.memory_space<vmem>>, vector<1x2x96xbf16>
    %262 = vector.shape_cast %261 : vector<1x2x96xbf16> to vector<2x96xbf16>
    %263 = arith.extf %262 : vector<2x96xbf16> to vector<2x96xf32>
    %264 = arith.truncf %254 : vector<2x32xf32> to vector<2x32xbf16>
    %cst_57 = arith.constant dense<0.000000e+00> : vector<2x96xf32>
    %265 = tpu.matmul %264, %3, %cst_57 {dimension_numbers = #tpu.dot_dimension_numbers<[1], [0], [0], [1], [0, 0, 1, 1], [], []>} : vector<2x32xbf16>, vector<32x96xbf16>, vector<2x96xf32> -> vector<2x96xf32>
    %266 = vector.extract_strided_slice %263 {offsets = [0, 0], sizes = [2, 32], strides = [1, 1]} : vector<2x96xf32> to vector<2x32xf32>
    %267 = vector.extract_strided_slice %265 {offsets = [0, 0], sizes = [2, 32], strides = [1, 1]} : vector<2x96xf32> to vector<2x32xf32>
    %268 = arith.addf %266, %267 : vector<2x32xf32>
    %269 = arith.negf %268 : vector<2x32xf32>
    %270 = math.exp %269 : vector<2x32xf32>
    %cst_58 = arith.constant 1.000000e+00 : f32
    %271 = vector.broadcast %cst_58 : f32 to vector<2x32xf32>
    %272 = arith.addf %271, %270 : vector<2x32xf32>
    %273 = arith.divf %271, %272 : vector<2x32xf32>
    %274 = vector.extract_strided_slice %263 {offsets = [0, 32], sizes = [2, 32], strides = [1, 1]} : vector<2x96xf32> to vector<2x32xf32>
    %275 = vector.extract_strided_slice %265 {offsets = [0, 32], sizes = [2, 32], strides = [1, 1]} : vector<2x96xf32> to vector<2x32xf32>
    %276 = arith.addf %274, %275 : vector<2x32xf32>
    %277 = arith.negf %276 : vector<2x32xf32>
    %278 = math.exp %277 : vector<2x32xf32>
    %cst_59 = arith.constant 1.000000e+00 : f32
    %279 = vector.broadcast %cst_59 : f32 to vector<2x32xf32>
    %280 = arith.addf %279, %278 : vector<2x32xf32>
    %281 = arith.divf %279, %280 : vector<2x32xf32>
    %282 = vector.extract_strided_slice %263 {offsets = [0, 64], sizes = [2, 32], strides = [1, 1]} : vector<2x96xf32> to vector<2x32xf32>
    %283 = vector.extract_strided_slice %265 {offsets = [0, 64], sizes = [2, 32], strides = [1, 1]} : vector<2x96xf32> to vector<2x32xf32>
    %284 = arith.addf %283, %6 : vector<2x32xf32>
    %285 = arith.mulf %273, %284 : vector<2x32xf32>
    %286 = arith.addf %282, %285 : vector<2x32xf32>
    %287 = math.tanh %286 : vector<2x32xf32>
    %288 = arith.subf %254, %287 : vector<2x32xf32>
    %289 = arith.mulf %281, %288 : vector<2x32xf32>
    %290 = arith.addf %287, %289 : vector<2x32xf32>
    %291 = arith.truncf %290 : vector<2x32xf32> to vector<2x32xbf16>
    %292 = arith.index_cast %c7_i32 : i32 to index
    %c0_60 = arith.constant 0 : index
    %c0_61 = arith.constant 0 : index
    %293 = vector.load %arg5[%292, %c0_60, %c0_61] : memref<8x2x32xbf16, #tpu.memory_space<vmem>>, vector<1x2x32xbf16>
    %294 = vector.shape_cast %293 : vector<1x2x32xbf16> to vector<2x32xbf16>
    %295 = vector.shape_cast %291 : vector<2x32xbf16> to vector<1x2x32xbf16>
    tpu.vector_store %arg5[%292, %c0_60, %c0_61], %295 {strides = array<i32>} : memref<8x2x32xbf16, #tpu.memory_space<vmem>>, vector<1x2x32xbf16>,
    %c8_i32 = arith.constant 8 : i32
    %c0_62 = arith.constant 0 : index
    %c0_63 = arith.constant 0 : index
    %296 = vector.load %arg7[%c0_62, %c0_63] : memref<2x32xf32, #tpu.memory_space<vmem>>, vector<2x32xf32>
    tpu.vector_store %arg7[%c0_62, %c0_63], %290 {strides = array<i32>} : memref<2x32xf32, #tpu.memory_space<vmem>>, vector<2x32xf32>,
    %c0_64 = arith.constant 0 : index
    %c0_65 = arith.constant 0 : index
    %297 = vector.load %arg6[%c0_64, %c0_65] : memref<2x32xf32, #tpu.memory_space<vmem>>, vector<2x32xf32>
    tpu.vector_store %arg6[%c0_64, %c0_65], %290 {strides = array<i32>} : memref<2x32xf32, #tpu.memory_space<vmem>>, vector<2x32xf32>,
    return
  }
  func.func @transform_0(%arg0: i32, %arg1: i32) -> (i32, i32, i32) {
    %c0_i32 = arith.constant 0 : i32
    %c0_i32_0 = arith.constant 0 : i32
    return %arg1, %arg0, %c0_i32 : i32, i32, i32
  }
  func.func @transform_1(%arg0: i32, %arg1: i32) -> (i32, i32) {
    %c0_i32 = arith.constant 0 : i32
    %c0_i32_0 = arith.constant 0 : i32
    %c0_i32_1 = arith.constant 0 : i32
    return %c0_i32, %c0_i32_0 : i32, i32
  }
  func.func @transform_2(%arg0: i32, %arg1: i32) -> (i32, i32) {
    %c0_i32 = arith.constant 0 : i32
    %c0_i32_0 = arith.constant 0 : i32
    %c0_i32_1 = arith.constant 0 : i32
    return %c0_i32, %c0_i32_0 : i32, i32
  }
  func.func @transform_3(%arg0: i32, %arg1: i32) -> (i32, i32, i32) {
    %c0_i32 = arith.constant 0 : i32
    %c0_i32_0 = arith.constant 0 : i32
    return %arg1, %arg0, %c0_i32 : i32, i32, i32
  }
  func.func @transform_4(%arg0: i32, %arg1: i32) -> (i32, i32) {
    %c0_i32 = arith.constant 0 : i32
    %c0_i32_0 = arith.constant 0 : i32
    return %arg0, %c0_i32 : i32, i32
  }
}

</mosaic_0001>

<llo_original>
// kernel: tpu_custom_call.1
$region0: #{tpu_custom_call.1}
  #allocation0 [shape = 'u32[]', space=smem, size = 0x4, offset = 0x4, fixed_abs, tag = 'smem constant byte address 0x4 - core index']
  #allocation1 [shape = 'u32[144,128]{1,0:T(1,128)}', space=vmem, size = 0x12000, scoped, tag = 'internal scratch']
  #allocation2 [shape = 'f32[2,32]{1,0:T(2,128)}', space=vmem, size = 0x400, scoped, tag = 'scratch operand']
  %s0 = inlined_call_operand.hbm [shape: bf16[8,2,96], index: 0, kind: input, shape index: {}]
  %s1 = inlined_call_operand.hbm [shape: bf16[32,96], index: 1, kind: input, shape index: {}]
  %s2 = inlined_call_operand.vmem [shape: f32[1,32], index: 2, kind: input, shape index: {}]
  %s3 = inlined_call_operand.hbm [shape: bf16[8,2,32], index: 3, kind: output, shape index: {0}]
  %s4 = inlined_call_operand.hbm [shape: f32[2,32], index: 4, kind: output, shape index: {1}]
  %5 = xla_tuple %s3, %s4
  %s6 = sld [smem:[#allocation0]]
  $region42: #{tpu_custom_call.1} parent=0
    _
  %s8 = ssub.s32 1, %s6
  %s9 = scalar_select 0, %s8, %s6
  $region1: #{tpu_custom_call.1} parent=0
    #allocation3 [shape = 'u8[4096]{0}', space=vmem, size = 0x1000, scoped, tag = 'input window, operand 0, single buffered']
    #allocation4 [shape = 's32[1]{0}', space=sflag, size = 0x4, scoped, tag = 'scoped memory for tpu_custom_call.1']
    #allocation5 [shape = 's32[1]{0}', space=sflag, size = 0x4, scoped, tag = 'scoped memory for tpu_custom_call.1']
    #allocation6 [shape = 'u8[8192]{0}', space=vmem, size = 0x2000, scoped, tag = 'input window, operand 1, single buffered']
    #allocation7 [shape = 's32[1]{0}', space=sflag, size = 0x4, scoped, tag = 'scoped memory for tpu_custom_call.1']
    #allocation8 [shape = 'u8[4096]{0}', space=vmem, size = 0x1000, scoped, tag = 'output window, operand 0, single buffered']
    #allocation9 [shape = 'u8[1024]{0}', space=vmem, size = 0x400, scoped, tag = 'output window, operand 1, single buffered']
    #allocation10 [shape = 's32[1]{0}', space=sflag, size = 0x4, scoped, tag = 'scoped memory for tpu_custom_call.1']
    %10 = vsyncpa [#allocation4], 0
    %11 = vsyncpa [#allocation7], 0
    %12 = vsyncpa [#allocation5], 0
    %13 = vsyncpa [#allocation10], 0
    // Predicated region
    $region2: #{tpu_custom_call.1} parent=1 // pred_check
      _
    $region3: #{tpu_custom_call.1} parent=1 // pred_check_branch
      %15 = sbr.rel (0) target = $region5
    $region4: #{tpu_custom_call.1} parent=1 // pred_region
      %s17 = ssub.s32 128, 128
      %18 = vsyncadd [#allocation4], %s17
      %s19 = sshll.u32 [#allocation3], 4
      %s20 = int_to_ptr.vmem [resolvable:$true] %s19
      %25 = dma.hbm_to_vmem [thread:$0]  %s0, 128, %s20, [#allocation4], 16, 16, 1
    $region5: #{tpu_custom_call.1} parent=1 // pred_fallthru
      _
    // Predicated region
    $region6: #{tpu_custom_call.1} parent=1 // pred_check
      _
    $region7: #{tpu_custom_call.1} parent=1 // pred_check_branch
      %27 = sbr.rel (0) target = $region9
    $region8: #{tpu_custom_call.1} parent=1 // pred_region
      %s29 = ssub.s32 256, 256
      %30 = vsyncadd [#allocation7], %s29
      %s31 = sshll.u32 [#allocation6], 4
      %s32 = int_to_ptr.vmem [resolvable:$true] %s31
      %37 = dma.hbm_to_vmem [thread:$0]  %s1, 256, %s32, [#allocation7], 64, 64, 4
    $region9: #{tpu_custom_call.1} parent=1 // pred_fallthru
      _
    // Predicated region
    $region10: #{tpu_custom_call.1} parent=1 // pred_check
      _
    $region11: #{tpu_custom_call.1} parent=1 // pred_check_branch
      %39 = sbr.rel (0) target = $region13
    $region12: #{tpu_custom_call.1} parent=1 // pred_region
      _
    $region13: #{tpu_custom_call.1} parent=1 // pred_fallthru
      _
    // Predicated region
    $region14: #{tpu_custom_call.1} parent=1 // pred_check
      _
    $region15: #{tpu_custom_call.1} parent=1 // pred_check_branch
      %41 = sbr.rel (0) target = $region17
    $region16: #{tpu_custom_call.1} parent=1 // pred_region
      %42 = dma.done [#allocation4], 128
    $region17: #{tpu_custom_call.1} parent=1 // pred_fallthru
      _
    // Predicated region
    $region18: #{tpu_custom_call.1} parent=1 // pred_check
      _
    $region19: #{tpu_custom_call.1} parent=1 // pred_check_branch
      %44 = sbr.rel (0) target = $region21
    $region20: #{tpu_custom_call.1} parent=1 // pred_region
      %45 = dma.done [#allocation7], 256
    $region21: #{tpu_custom_call.1} parent=1 // pred_fallthru
      _
    %p47 = scmp.eq.s32.totalorder 0, 0
    // Predicated region
    $region22: #{tpu_custom_call.1} parent=1 // pred_check
      %p48 = pneg %p47
    $region23: #{tpu_custom_call.1} parent=1 // pred_check_branch
      %50 = sbr.rel (%p48) target = $region25
    $region24: #{tpu_custom_call.1} parent=1 // pred_region
      %vm51 = vcmask 254976
      %52 = vst.msk [vmem:[#allocation2] sm:$0x3] %vm51, 0.0
    $region25: #{tpu_custom_call.1} parent=1 // pred_fallthru
      _
    %v53 = vld [vmem:[#allocation6] sm:$0xf]
    %v54 = vld [vmem:[#allocation6 + $0x4] sm:$0xf]
    %v55 = vld [vmem:[#allocation6 + $0x8] sm:$0xf]
    %v56 = vld [vmem:[#allocation6 + $0xc] sm:$0xf]
    %v57 = vld [vmem:[%s2] sm:$0x1]
    %v59 = vlaneseq
    %v60 = vshrl.u32 %v59, 7
    %v61 = vsub.s32 0, %v60
    %v62 = vrot.slane %v57, %v61
    %v63 = vld [vmem:[#allocation2] sm:$0x3]
    %v64 = vld [vmem:[#allocation3] sm:$0x1]
    %v65 = vunpack.c.l.bf16 %v64
    %v66 = vpack.c.bf16 %v63, %v63
    %v71 = vunpack.c.l.b16 %v53
    %v72 = vunpack.c.l.b16 %v54
    %v73 = vunpack.c.l.b16 %v55
    %v74 = vunpack.c.l.b16 %v56
    %v75 = vpack.c.b16 %v72, %v71
    %v76 = vpack.c.b16 %v74, %v73
    %vm79 = vcmask 261120
    %v81 = vsel %vm79, %v66, 0
    %83 = vmatprep.subr.bf16.mxu0 0
    %84 = vmatpush1.bf16.msra.mxu0 0
    %85 = vmatprep.subr.bf16.mxu0 0
    %86 = vmatpush1.bf16.msra.mxu0 0
    %87 = vmatprep.subr.bf16.mxu0 0
    %88 = vmatpush1.bf16.msra.mxu0 0
    %89 = vmatprep.subr.bf16.mxu0 0
    %90 = vmatpush1.bf16.msra.mxu0 0
    %91 = vmatprep.subr.bf16.mxu0 0
    %92 = vmatpush1.bf16.msra.mxu0 0
    %93 = vmatprep.subr.bf16.mxu0 0
    %94 = vmatpush1.bf16.msra.mxu0 0
    %95 = vmatprep.subr.bf16.mxu0 0
    %96 = vmatpush1.bf16.msra.mxu0 %v76
    %97 = vmatprep.subr.bf16.mxu0 0
    %98 = vmatpush1.bf16.msra.mxu0 %v75
    %99 = vmatprep.subr.bf16.mxu0 0
    %100 = vmatpush2.bf16.msra.mxu0 0
    %101 = vmatprep.subr.bf16.mxu0 0
    %102 = vmatpush2.bf16.msra.mxu0 0
    %103 = vmatprep.subr.bf16.mxu0 0
    %104 = vmatpush2.bf16.msra.mxu0 0
    %105 = vmatprep.subr.bf16.mxu0 0
    %106 = vmatpush2.bf16.msra.mxu0 0
    %107 = vmatprep.subr.bf16.mxu0 0
    %108 = vmatpush2.bf16.msra.mxu0 0
    %109 = vmatprep.subr.bf16.mxu0 0
    %110 = vmatpush2.bf16.msra.mxu0 0
    %111 = vmatprep.subr.bf16.mxu0 0
    %112 = vmatpush2.bf16.msra.mxu0 0
    %113 = vmatprep.subr.bf16.mxu0 0
    %114 = vmatpush2.bf16.msra.mxu0 0
    %115 = vmatprep.mubr.bf16.mxu0 0
    %116 = vmatmul.mubr.bf16.gmra.mxu0 %v81
    %v117 = vpop.f32.mrf.mxu0
    %v118 = vadd.f32 0.0, %v117
    %v119 = vpop.f32.mrf.mxu0
    %v120 = vpop.f32.mrf.mxu0
    %v121 = vpop.f32.mrf.mxu0
    %122 = vdwg.mxu0
    %v123 = vadd.f32 %v65, %v118
    %v124 = vxor.u32 %v123, 2147483648
    %v125 = vmul.f32 %v124, 1.442695
    %v126 = vpow.pop %v125
    %v127 = vadd.f32 %v126, 1.0
    %v128 = vrcp.pop %v127
    %v129 = vmul.f32 1.0, %v128
    %130 = vrot.lane.b32.xlu0 %v62, 64
    %v131 = vpop.permute.xlu0 %130
    %v133 = vadd.f32 %v118, %v131
    %v136 = vunpack.c.l.s4 1983009808
    %v137 = vunpack.c.0.s8 %v136
    %v138 = vlaneseq
    %v139 = vshrl.u32 %v138, 7
    %v140 = vsub.s32 %v137, %v139
    %v141 = vrot.slane %v133, %v140
    %142 = vrot.lane.b32.xlu0 %v141, 64
    %v143 = vpop.permute.xlu0 %142
    %v145 = vmul.f32 %v129, %v143
    %147 = vrot.lane.b32.xlu0 %v145, 64
    %v148 = vpop.permute.xlu0 %147
    %v150 = vadd.f32 %v65, %v148
    %v151 = vtanh.pop %v150
    %v154 = vunpack.c.l.s4 1983009808
    %v155 = vunpack.c.0.s8 %v154
    %v156 = vlaneseq
    %v157 = vshrl.u32 %v156, 7
    %v158 = vsub.s32 %v155, %v157
    %v159 = vrot.slane %v151, %v158
    %160 = vrot.lane.b32.xlu0 %v159, 64
    %v161 = vpop.permute.xlu0 %160
    %v163 = vsub.f32 %v63, %v161
    %v166 = vunpack.c.l.s4 1983009808
    %v167 = vunpack.c.0.s8 %v166
    %v168 = vlaneseq
    %v169 = vshrl.u32 %v168, 7
    %v170 = vsub.s32 %v167, %v169
    %v171 = vrot.slane %v163, %v170
    %172 = vrot.lane.b32.xlu0 %v171, 32
    %v173 = vpop.permute.xlu0 %172
    %v175 = vmul.f32 %v129, %v173
    %177 = vrot.lane.b32.xlu0 %v175, 32
    %v178 = vpop.permute.xlu0 %177
    %v180 = vadd.f32 %v151, %v178
    %v181 = vpack.c.bf16 %v180, %v180
    %v184 = vunpack.c.l.s4 1966171168
    %v185 = vunpack.c.0.s8 %v184
    %v186 = vlaneseq
    %v187 = vshrl.u32 %v186, 7
    %v188 = vsub.s32 %v185, %v187
    %v189 = vrot.slane %v181, %v188
    %v191 = vunpack.c.l.s4 1966171168
    %v192 = vunpack.c.0.s8 %v191
    %v193 = vlaneseq
    %v194 = vshrl.u32 %v193, 7
    %v195 = vsub.s32 %v192, %v194
    %v196 = vrot.slane %v189, %v195
    %197 = vrot.lane.b32.xlu0 %v196, 64
    %v198 = vpop.permute.xlu0 %197
    %vm200 = vcmask 253952
    %201 = vst.msk [vmem:[#allocation8] sm:$0x1] %vm200, %v198
    %s202 = scalar_lea.vmem [#allocation3], 1
    %v203 = vld [vmem:[%s202] sm:$0x1]
    %v204 = vunpack.c.l.bf16 %v203
    %205 = vrot.lane.b32.xlu0 %v181, 64
    %v206 = vpop.permute.xlu0 %205
    %v208 = vsel %vm79, %v206, 0
    %210 = vmatprep.subr.bf16.mxu0 0
    %211 = vmatpush1.bf16.msra.mxu0 0
    %212 = vmatprep.subr.bf16.mxu0 0
    %213 = vmatpush1.bf16.msra.mxu0 0
    %214 = vmatprep.subr.bf16.mxu0 0
    %215 = vmatpush1.bf16.msra.mxu0 0
    %216 = vmatprep.subr.bf16.mxu0 0
    %217 = vmatpush1.bf16.msra.mxu0 0
    %218 = vmatprep.subr.bf16.mxu0 0
    %219 = vmatpush1.bf16.msra.mxu0 0
    %220 = vmatprep.subr.bf16.mxu0 0
    %221 = vmatpush1.bf16.msra.mxu0 0
    %222 = vmatprep.subr.bf16.mxu0 0
    %223 = vmatpush1.bf16.msra.mxu0 %v76
    %224 = vmatprep.subr.bf16.mxu0 0
    %225 = vmatpush1.bf16.msra.mxu0 %v75
    %226 = vmatprep.subr.bf16.mxu0 0
    %227 = vmatpush2.bf16.msra.mxu0 0
    %228 = vmatprep.subr.bf16.mxu0 0
    %229 = vmatpush2.bf16.msra.mxu0 0
    %230 = vmatprep.subr.bf16.mxu0 0
    %231 = vmatpush2.bf16.msra.mxu0 0
    %232 = vmatprep.subr.bf16.mxu0 0
    %233 = vmatpush2.bf16.msra.mxu0 0
    %234 = vmatprep.subr.bf16.mxu0 0
    %235 = vmatpush2.bf16.msra.mxu0 0
    %236 = vmatprep.subr.bf16.mxu0 0
    %237 = vmatpush2.bf16.msra.mxu0 0
    %238 = vmatprep.subr.bf16.mxu0 0
    %239 = vmatpush2.bf16.msra.mxu0 0
    %240 = vmatprep.subr.bf16.mxu0 0
    %241 = vmatpush2.bf16.msra.mxu0 0
    %242 = vmatprep.mubr.bf16.mxu0 0
    %243 = vmatmul.mubr.bf16.gmra.mxu0 %v208
    %v244 = vpop.f32.mrf.mxu0
    %v245 = vadd.f32 0.0, %v244
    %v246 = vpop.f32.mrf.mxu0
    %v247 = vpop.f32.mrf.mxu0
    %v248 = vpop.f32.mrf.mxu0
    %249 = vdwg.mxu0
    %v250 = vadd.f32 %v204, %v245
    %v251 = vxor.u32 %v250, 2147483648
    %v252 = vmul.f32 %v251, 1.442695
    %v253 = vpow.pop %v252
    %v254 = vadd.f32 %v253, 1.0
    %v255 = vrcp.pop %v254
    %v256 = vmul.f32 1.0, %v255
    %v257 = vadd.f32 %v245, %v131
    %v260 = vunpack.c.l.s4 1983009808
    %v261 = vunpack.c.0.s8 %v260
    %v262 = vlaneseq
    %v263 = vshrl.u32 %v262, 7
    %v264 = vsub.s32 %v261, %v263
    %v265 = vrot.slane %v257, %v264
    %266 = vrot.lane.b32.xlu0 %v265, 64
    %v267 = vpop.permute.xlu0 %266
    %v269 = vmul.f32 %v256, %v267
    %271 = vrot.lane.b32.xlu0 %v269, 64
    %v272 = vpop.permute.xlu0 %271
    %v274 = vadd.f32 %v204, %v272
    %v275 = vtanh.pop %v274
    %v276 = vsub.f32 %v180, %v275
    %278 = vrot.lane.b32.xlu0 %v276, 96
    %v279 = vpop.permute.xlu0 %278
    %v281 = vmul.f32 %v256, %v279
    %283 = vrot.lane.b32.xlu0 %v281, 32
    %v284 = vpop.permute.xlu0 %283
    %v286 = vadd.f32 %v275, %v284
    %v287 = vpack.c.bf16 %v286, %v286
    %v290 = vunpack.c.l.s4 1966171168
    %v291 = vunpack.c.0.s8 %v290
    %v292 = vlaneseq
    %v293 = vshrl.u32 %v292, 7
    %v294 = vsub.s32 %v291, %v293
    %v295 = vrot.slane %v287, %v294
    %v297 = vunpack.c.l.s4 1966171168
    %v298 = vunpack.c.0.s8 %v297
    %v299 = vlaneseq
    %v300 = vshrl.u32 %v299, 7
    %v301 = vsub.s32 %v298, %v300
    %v302 = vrot.slane %v295, %v301
    %303 = vrot.lane.b32.xlu0 %v302, 64
    %v304 = vpop.permute.xlu0 %303
    %s306 = scalar_lea.vmem [#allocation8], 1
    %307 = vst.msk [vmem:[%s306] sm:$0x1] %vm200, %v304
    %s308 = scalar_lea.vmem [#allocation3], 2
    %v309 = vld [vmem:[%s308] sm:$0x1]
    %v310 = vunpack.c.l.bf16 %v309
    %311 = vrot.lane.b32.xlu0 %v287, 64
    %v312 = vpop.permute.xlu0 %311
    %v314 = vsel %vm79, %v312, 0
    %316 = vmatprep.subr.bf16.mxu0 0
    %317 = vmatpush1.bf16.msra.mxu0 0
    %318 = vmatprep.subr.bf16.mxu0 0
    %319 = vmatpush1.bf16.msra.mxu0 0
    %320 = vmatprep.subr.bf16.mxu0 0
    %321 = vmatpush1.bf16.msra.mxu0 0
    %322 = vmatprep.subr.bf16.mxu0 0
    %323 = vmatpush1.bf16.msra.mxu0 0
    %324 = vmatprep.subr.bf16.mxu0 0
    %325 = vmatpush1.bf16.msra.mxu0 0
    %326 = vmatprep.subr.bf16.mxu0 0
    %327 = vmatpush1.bf16.msra.mxu0 0
    %328 = vmatprep.subr.bf16.mxu0 0
    %329 = vmatpush1.bf16.msra.mxu0 %v76
    %330 = vmatprep.subr.bf16.mxu0 0
    %331 = vmatpush1.bf16.msra.mxu0 %v75
    %332 = vmatprep.subr.bf16.mxu0 0
    %333 = vmatpush2.bf16.msra.mxu0 0
    %334 = vmatprep.subr.bf16.mxu0 0
    %335 = vmatpush2.bf16.msra.mxu0 0
    %336 = vmatprep.subr.bf16.mxu0 0
    %337 = vmatpush2.bf16.msra.mxu0 0
    %338 = vmatprep.subr.bf16.mxu0 0
    %339 = vmatpush2.bf16.msra.mxu0 0
    %340 = vmatprep.subr.bf16.mxu0 0
    %341 = vmatpush2.bf16.msra.mxu0 0
    %342 = vmatprep.subr.bf16.mxu0 0
    %343 = vmatpush2.bf16.msra.mxu0 0
    %344 = vmatprep.subr.bf16.mxu0 0
    %345 = vmatpush2.bf16.msra.mxu0 0
    %346 = vmatprep.subr.bf16.mxu0 0
    %347 = vmatpush2.bf16.msra.mxu0 0
    %348 = vmatprep.mubr.bf16.mxu0 0
    %349 = vmatmul.mubr.bf16.gmra.mxu0 %v314
    %v350 = vpop.f32.mrf.mxu0
    %v351 = vadd.f32 0.0, %v350
    %v352 = vpop.f32.mrf.mxu0
    %v353 = vpop.f32.mrf.mxu0
    %v354 = vpop.f32.mrf.mxu0
    %355 = vdwg.mxu0
    %v356 = vadd.f32 %v310, %v351
    %v357 = vxor.u32 %v356, 2147483648
    %v358 = vmul.f32 %v357, 1.442695
    %v359 = vpow.pop %v358
    %v360 = vadd.f32 %v359, 1.0
    %v361 = vrcp.pop %v360
    %v362 = vmul.f32 1.0, %v361
    %v363 = vadd.f32 %v351, %v131
    %v366 = vunpack.c.l.s4 1983009808
    %v367 = vunpack.c.0.s8 %v366
    %v368 = vlaneseq
    %v369 = vshrl.u32 %v368, 7
    %v370 = vsub.s32 %v367, %v369
    %v371 = vrot.slane %v363, %v370
    %372 = vrot.lane.b32.xlu0 %v371, 64
    %v373 = vpop.permute.xlu0 %372
    %v375 = vmul.f32 %v362, %v373
    %377 = vrot.lane.b32.xlu0 %v375, 64
    %v378 = vpop.permute.xlu0 %377
    %v380 = vadd.f32 %v310, %v378
    %v381 = vtanh.pop %v380
    %v382 = vsub.f32 %v286, %v381
    %384 = vrot.lane.b32.xlu0 %v382, 96
    %v385 = vpop.permute.xlu0 %384
    %v387 = vmul.f32 %v362, %v385
    %389 = vrot.lane.b32.xlu0 %v387, 32
    %v390 = vpop.permute.xlu0 %389
    %v392 = vadd.f32 %v381, %v390
    %v393 = vpack.c.bf16 %v392, %v392
    %v396 = vunpack.c.l.s4 1966171168
    %v397 = vunpack.c.0.s8 %v396
    %v398 = vlaneseq
    %v399 = vshrl.u32 %v398, 7
    %v400 = vsub.s32 %v397, %v399
    %v401 = vrot.slane %v393, %v400
    %v403 = vunpack.c.l.s4 1966171168
    %v404 = vunpack.c.0.s8 %v403
    %v405 = vlaneseq
    %v406 = vshrl.u32 %v405, 7
    %v407 = vsub.s32 %v404, %v406
    %v408 = vrot.slane %v401, %v407
    %409 = vrot.lane.b32.xlu0 %v408, 64
    %v410 = vpop.permute.xlu0 %409
    %s412 = scalar_lea.vmem [#allocation8], 2
    %413 = vst.msk [vmem:[%s412] sm:$0x1] %vm200, %v410
    %s414 = scalar_lea.vmem [#allocation3], 3
    %v415 = vld [vmem:[%s414] sm:$0x1]
    %v416 = vunpack.c.l.bf16 %v415
    %417 = vrot.lane.b32.xlu0 %v393, 64
    %v418 = vpop.permute.xlu0 %417
    %v420 = vsel %vm79, %v418, 0
    %422 = vmatprep.subr.bf16.mxu0 0
    %423 = vmatpush1.bf16.msra.mxu0 0
    %424 = vmatprep.subr.bf16.mxu0 0
    %425 = vmatpush1.bf16.msra.mxu0 0
    %426 = vmatprep.subr.bf16.mxu0 0
    %427 = vmatpush1.bf16.msra.mxu0 0
    %428 = vmatprep.subr.bf16.mxu0 0
    %429 = vmatpush1.bf16.msra.mxu0 0
    %430 = vmatprep.subr.bf16.mxu0 0
    %431 = vmatpush1.bf16.msra.mxu0 0
    %432 = vmatprep.subr.bf16.mxu0 0
    %433 = vmatpush1.bf16.msra.mxu0 0
    %434 = vmatprep.subr.bf16.mxu0 0
    %435 = vmatpush1.bf16.msra.mxu0 %v76
    %436 = vmatprep.subr.bf16.mxu0 0
    %437 = vmatpush1.bf16.msra.mxu0 %v75
    %438 = vmatprep.subr.bf16.mxu0 0
    %439 = vmatpush2.bf16.msra.mxu0 0
    %440 = vmatprep.subr.bf16.mxu0 0
    %441 = vmatpush2.bf16.msra.mxu0 0
    %442 = vmatprep.subr.bf16.mxu0 0
    %443 = vmatpush2.bf16.msra.mxu0 0
    %444 = vmatprep.subr.bf16.mxu0 0
    %445 = vmatpush2.bf16.msra.mxu0 0
    %446 = vmatprep.subr.bf16.mxu0 0
    %447 = vmatpush2.bf16.msra.mxu0 0
    %448 = vmatprep.subr.bf16.mxu0 0
    %449 = vmatpush2.bf16.msra.mxu0 0
    %450 = vmatprep.subr.bf16.mxu0 0
    %451 = vmatpush2.bf16.msra.mxu0 0
    %452 = vmatprep.subr.bf16.mxu0 0
    %453 = vmatpush2.bf16.msra.mxu0 0
    %454 = vmatprep.mubr.bf16.mxu0 0
    %455 = vmatmul.mubr.bf16.gmra.mxu0 %v420
    %v456 = vpop.f32.mrf.mxu0
    %v457 = vadd.f32 0.0, %v456
    %v458 = vpop.f32.mrf.mxu0
    %v459 = vpop.f32.mrf.mxu0
    %v460 = vpop.f32.mrf.mxu0
    %461 = vdwg.mxu0
    %v462 = vadd.f32 %v416, %v457
    %v463 = vxor.u32 %v462, 2147483648
    %v464 = vmul.f32 %v463, 1.442695
    %v465 = vpow.pop %v464
    %v466 = vadd.f32 %v465, 1.0
    %v467 = vrcp.pop %v466
    %v468 = vmul.f32 1.0, %v467
    %v469 = vadd.f32 %v457, %v131
    %v472 = vunpack.c.l.s4 1983009808
    %v473 = vunpack.c.0.s8 %v472
    %v474 = vlaneseq
    %v475 = vshrl.u32 %v474, 7
    %v476 = vsub.s32 %v473, %v475
    %v477 = vrot.slane %v469, %v476
    %478 = vrot.lane.b32.xlu0 %v477, 64
    %v479 = vpop.permute.xlu0 %478
    %v481 = vmul.f32 %v468, %v479
    %483 = vrot.lane.b32.xlu0 %v481, 64
    %v484 = vpop.permute.xlu0 %483
    %v486 = vadd.f32 %v416, %v484
    %v487 = vtanh.pop %v486
    %v488 = vsub.f32 %v392, %v487
    %490 = vrot.lane.b32.xlu0 %v488, 96
    %v491 = vpop.permute.xlu0 %490
    %v493 = vmul.f32 %v468, %v491
    %495 = vrot.lane.b32.xlu0 %v493, 32
    %v496 = vpop.permute.xlu0 %495
    %v498 = vadd.f32 %v487, %v496
    %v499 = vpack.c.bf16 %v498, %v498
    %v502 = vunpack.c.l.s4 1966171168
    %v503 = vunpack.c.0.s8 %v502
    %v504 = vlaneseq
    %v505 = vshrl.u32 %v504, 7
    %v506 = vsub.s32 %v503, %v505
    %v507 = vrot.slane %v499, %v506
    %v509 = vunpack.c.l.s4 1966171168
    %v510 = vunpack.c.0.s8 %v509
    %v511 = vlaneseq
    %v512 = vshrl.u32 %v511, 7
    %v513 = vsub.s32 %v510, %v512
    %v514 = vrot.slane %v507, %v513
    %515 = vrot.lane.b32.xlu0 %v514, 64
    %v516 = vpop.permute.xlu0 %515
    %s518 = scalar_lea.vmem [#allocation8], 3
    %519 = vst.msk [vmem:[%s518] sm:$0x1] %vm200, %v516
    %s520 = scalar_lea.vmem [#allocation3], 4
    %v521 = vld [vmem:[%s520] sm:$0x1]
    %v522 = vunpack.c.l.bf16 %v521
    %523 = vrot.lane.b32.xlu0 %v499, 64
    %v524 = vpop.permute.xlu0 %523
    %v526 = vsel %vm79, %v524, 0
    %528 = vmatprep.subr.bf16.mxu0 0
    %529 = vmatpush1.bf16.msra.mxu0 0
    %530 = vmatprep.subr.bf16.mxu0 0
    %531 = vmatpush1.bf16.msra.mxu0 0
    %532 = vmatprep.subr.bf16.mxu0 0
    %533 = vmatpush1.bf16.msra.mxu0 0
    %534 = vmatprep.subr.bf16.mxu0 0
    %535 = vmatpush1.bf16.msra.mxu0 0
    %536 = vmatprep.subr.bf16.mxu0 0
    %537 = vmatpush1.bf16.msra.mxu0 0
    %538 = vmatprep.subr.bf16.mxu0 0
    %539 = vmatpush1.bf16.msra.mxu0 0
    %540 = vmatprep.subr.bf16.mxu0 0
    %541 = vmatpush1.bf16.msra.mxu0 %v76
    %542 = vmatprep.subr.bf16.mxu0 0
    %543 = vmatpush1.bf16.msra.mxu0 %v75
    %544 = vmatprep.subr.bf16.mxu0 0
    %545 = vmatpush2.bf16.msra.mxu0 0
    %546 = vmatprep.subr.bf16.mxu0 0
    %547 = vmatpush2.bf16.msra.mxu0 0
    %548 = vmatprep.subr.bf16.mxu0 0
    %549 = vmatpush2.bf16.msra.mxu0 0
    %550 = vmatprep.subr.bf16.mxu0 0
    %551 = vmatpush2.bf16.msra.mxu0 0
    %552 = vmatprep.subr.bf16.mxu0 0
    %553 = vmatpush2.bf16.msra.mxu0 0
    %554 = vmatprep.subr.bf16.mxu0 0
    %555 = vmatpush2.bf16.msra.mxu0 0
    %556 = vmatprep.subr.bf16.mxu0 0
    %557 = vmatpush2.bf16.msra.mxu0 0
    %558 = vmatprep.subr.bf16.mxu0 0
    %559 = vmatpush2.bf16.msra.mxu0 0
    %560 = vmatprep.mubr.bf16.mxu0 0
    %561 = vmatmul.mubr.bf16.gmra.mxu0 %v526
    %v562 = vpop.f32.mrf.mxu0
    %v563 = vadd.f32 0.0, %v562
    %v564 = vpop.f32.mrf.mxu0
    %v565 = vpop.f32.mrf.mxu0
    %v566 = vpop.f32.mrf.mxu0
    %567 = vdwg.mxu0
    %v568 = vadd.f32 %v522, %v563
    %v569 = vxor.u32 %v568, 2147483648
    %v570 = vmul.f32 %v569, 1.442695
    %v571 = vpow.pop %v570
    %v572 = vadd.f32 %v571, 1.0
    %v573 = vrcp.pop %v572
    %v574 = vmul.f32 1.0, %v573
    %v575 = vadd.f32 %v563, %v131
    %v578 = vunpack.c.l.s4 1983009808
    %v579 = vunpack.c.0.s8 %v578
    %v580 = vlaneseq
    %v581 = vshrl.u32 %v580, 7
    %v582 = vsub.s32 %v579, %v581
    %v583 = vrot.slane %v575, %v582
    %584 = vrot.lane.b32.xlu0 %v583, 64
    %v585 = vpop.permute.xlu0 %584
    %v587 = vmul.f32 %v574, %v585
    %589 = vrot.lane.b32.xlu0 %v587, 64
    %v590 = vpop.permute.xlu0 %589
    %v592 = vadd.f32 %v522, %v590
    %v593 = vtanh.pop %v592
    %v594 = vsub.f32 %v498, %v593
    %596 = vrot.lane.b32.xlu0 %v594, 96
    %v597 = vpop.permute.xlu0 %596
    %v599 = vmul.f32 %v574, %v597
    %601 = vrot.lane.b32.xlu0 %v599, 32
    %v602 = vpop.permute.xlu0 %601
    %v604 = vadd.f32 %v593, %v602
    %v605 = vpack.c.bf16 %v604, %v604
    %v608 = vunpack.c.l.s4 1966171168
    %v609 = vunpack.c.0.s8 %v608
    %v610 = vlaneseq
    %v611 = vshrl.u32 %v610, 7
    %v612 = vsub.s32 %v609, %v611
    %v613 = vrot.slane %v605, %v612
    %v615 = vunpack.c.l.s4 1966171168
    %v616 = vunpack.c.0.s8 %v615
    %v617 = vlaneseq
    %v618 = vshrl.u32 %v617, 7
    %v619 = vsub.s32 %v616, %v618
    %v620 = vrot.slane %v613, %v619
    %621 = vrot.lane.b32.xlu0 %v620, 64
    %v622 = vpop.permute.xlu0 %621
    %s624 = scalar_lea.vmem [#allocation8], 4
    %625 = vst.msk [vmem:[%s624] sm:$0x1] %vm200, %v622
    %s626 = scalar_lea.vmem [#allocation3], 5
    %v627 = vld [vmem:[%s626] sm:$0x1]
    %v628 = vunpack.c.l.bf16 %v627
    %629 = vrot.lane.b32.xlu0 %v605, 64
    %v630 = vpop.permute.xlu0 %629
    %v632 = vsel %vm79, %v630, 0
    %634 = vmatprep.subr.bf16.mxu0 0
    %635 = vmatpush1.bf16.msra.mxu0 0
    %636 = vmatprep.subr.bf16.mxu0 0
    %637 = vmatpush1.bf16.msra.mxu0 0
    %638 = vmatprep.subr.bf16.mxu0 0
    %639 = vmatpush1.bf16.msra.mxu0 0
    %640 = vmatprep.subr.bf16.mxu0 0
    %641 = vmatpush1.bf16.msra.mxu0 0
    %642 = vmatprep.subr.bf16.mxu0 0
    %643 = vmatpush1.bf16.msra.mxu0 0
    %644 = vmatprep.subr.bf16.mxu0 0
    %645 = vmatpush1.bf16.msra.mxu0 0
    %646 = vmatprep.subr.bf16.mxu0 0
    %647 = vmatpush1.bf16.msra.mxu0 %v76
    %648 = vmatprep.subr.bf16.mxu0 0
    %649 = vmatpush1.bf16.msra.mxu0 %v75
    %650 = vmatprep.subr.bf16.mxu0 0
    %651 = vmatpush2.bf16.msra.mxu0 0
    %652 = vmatprep.subr.bf16.mxu0 0
    %653 = vmatpush2.bf16.msra.mxu0 0
    %654 = vmatprep.subr.bf16.mxu0 0
    %655 = vmatpush2.bf16.msra.mxu0 0
    %656 = vmatprep.subr.bf16.mxu0 0
    %657 = vmatpush2.bf16.msra.mxu0 0
    %658 = vmatprep.subr.bf16.mxu0 0
    %659 = vmatpush2.bf16.msra.mxu0 0
    %660 = vmatprep.subr.bf16.mxu0 0
    %661 = vmatpush2.bf16.msra.mxu0 0
    %662 = vmatprep.subr.bf16.mxu0 0
    %663 = vmatpush2.bf16.msra.mxu0 0
    %664 = vmatprep.subr.bf16.mxu0 0
    %665 = vmatpush2.bf16.msra.mxu0 0
    %666 = vmatprep.mubr.bf16.mxu0 0
    %667 = vmatmul.mubr.bf16.gmra.mxu0 %v632
    %v668 = vpop.f32.mrf.mxu0
    %v669 = vadd.f32 0.0, %v668
    %v670 = vpop.f32.mrf.mxu0
    %v671 = vpop.f32.mrf.mxu0
    %v672 = vpop.f32.mrf.mxu0
    %673 = vdwg.mxu0
    %v674 = vadd.f32 %v628, %v669
    %v675 = vxor.u32 %v674, 2147483648
    %v676 = vmul.f32 %v675, 1.442695
    %v677 = vpow.pop %v676
    %v678 = vadd.f32 %v677, 1.0
    %v679 = vrcp.pop %v678
    %v680 = vmul.f32 1.0, %v679
    %v681 = vadd.f32 %v669, %v131
    %v684 = vunpack.c.l.s4 1983009808
    %v685 = vunpack.c.0.s8 %v684
    %v686 = vlaneseq
    %v687 = vshrl.u32 %v686, 7
    %v688 = vsub.s32 %v685, %v687
    %v689 = vrot.slane %v681, %v688
    %690 = vrot.lane.b32.xlu0 %v689, 64
    %v691 = vpop.permute.xlu0 %690
    %v693 = vmul.f32 %v680, %v691
    %695 = vrot.lane.b32.xlu0 %v693, 64
    %v696 = vpop.permute.xlu0 %695
    %v698 = vadd.f32 %v628, %v696
    %v699 = vtanh.pop %v698
    %v700 = vsub.f32 %v604, %v699
    %702 = vrot.lane.b32.xlu0 %v700, 96
    %v703 = vpop.permute.xlu0 %702
    %v705 = vmul.f32 %v680, %v703
    %707 = vrot.lane.b32.xlu0 %v705, 32
    %v708 = vpop.permute.xlu0 %707
    %v710 = vadd.f32 %v699, %v708
    %v711 = vpack.c.bf16 %v710, %v710
    %v714 = vunpack.c.l.s4 1966171168
    %v715 = vunpack.c.0.s8 %v714
    %v716 = vlaneseq
    %v717 = vshrl.u32 %v716, 7
    %v718 = vsub.s32 %v715, %v717
    %v719 = vrot.slane %v711, %v718
    %v721 = vunpack.c.l.s4 1966171168
    %v722 = vunpack.c.0.s8 %v721
    %v723 = vlaneseq
    %v724 = vshrl.u32 %v723, 7
    %v725 = vsub.s32 %v722, %v724
    %v726 = vrot.slane %v719, %v725
    %727 = vrot.lane.b32.xlu0 %v726, 64
    %v728 = vpop.permute.xlu0 %727
    %s730 = scalar_lea.vmem [#allocation8], 5
    %731 = vst.msk [vmem:[%s730] sm:$0x1] %vm200, %v728
    %s732 = scalar_lea.vmem [#allocation3], 6
    %v733 = vld [vmem:[%s732] sm:$0x1]
    %v734 = vunpack.c.l.bf16 %v733
    %735 = vrot.lane.b32.xlu0 %v711, 64
    %v736 = vpop.permute.xlu0 %735
    %v738 = vsel %vm79, %v736, 0
    %740 = vmatprep.subr.bf16.mxu0 0
    %741 = vmatpush1.bf16.msra.mxu0 0
    %742 = vmatprep.subr.bf16.mxu0 0
    %743 = vmatpush1.bf16.msra.mxu0 0
    %744 = vmatprep.subr.bf16.mxu0 0
    %745 = vmatpush1.bf16.msra.mxu0 0
    %746 = vmatprep.subr.bf16.mxu0 0
    %747 = vmatpush1.bf16.msra.mxu0 0
    %748 = vmatprep.subr.bf16.mxu0 0
    %749 = vmatpush1.bf16.msra.mxu0 0
    %750 = vmatprep.subr.bf16.mxu0 0
    %751 = vmatpush1.bf16.msra.mxu0 0
    %752 = vmatprep.subr.bf16.mxu0 0
    %753 = vmatpush1.bf16.msra.mxu0 %v76
    %754 = vmatprep.subr.bf16.mxu0 0
    %755 = vmatpush1.bf16.msra.mxu0 %v75
    %756 = vmatprep.subr.bf16.mxu0 0
    %757 = vmatpush2.bf16.msra.mxu0 0
    %758 = vmatprep.subr.bf16.mxu0 0
    %759 = vmatpush2.bf16.msra.mxu0 0
    %760 = vmatprep.subr.bf16.mxu0 0
    %761 = vmatpush2.bf16.msra.mxu0 0
    %762 = vmatprep.subr.bf16.mxu0 0
    %763 = vmatpush2.bf16.msra.mxu0 0
    %764 = vmatprep.subr.bf16.mxu0 0
    %765 = vmatpush2.bf16.msra.mxu0 0
    %766 = vmatprep.subr.bf16.mxu0 0
    %767 = vmatpush2.bf16.msra.mxu0 0
    %768 = vmatprep.subr.bf16.mxu0 0
    %769 = vmatpush2.bf16.msra.mxu0 0
    %770 = vmatprep.subr.bf16.mxu0 0
    %771 = vmatpush2.bf16.msra.mxu0 0
    %772 = vmatprep.mubr.bf16.mxu0 0
    %773 = vmatmul.mubr.bf16.gmra.mxu0 %v738
    %v774 = vpop.f32.mrf.mxu0
    %v775 = vadd.f32 0.0, %v774
    %v776 = vpop.f32.mrf.mxu0
    %v777 = vpop.f32.mrf.mxu0
    %v778 = vpop.f32.mrf.mxu0
    %779 = vdwg.mxu0
    %v780 = vadd.f32 %v734, %v775
    %v781 = vxor.u32 %v780, 2147483648
    %v782 = vmul.f32 %v781, 1.442695
    %v783 = vpow.pop %v782
    %v784 = vadd.f32 %v783, 1.0
    %v785 = vrcp.pop %v784
    %v786 = vmul.f32 1.0, %v785
    %v787 = vadd.f32 %v775, %v131
    %v790 = vunpack.c.l.s4 1983009808
    %v791 = vunpack.c.0.s8 %v790
    %v792 = vlaneseq
    %v793 = vshrl.u32 %v792, 7
    %v794 = vsub.s32 %v791, %v793
    %v795 = vrot.slane %v787, %v794
    %796 = vrot.lane.b32.xlu0 %v795, 64
    %v797 = vpop.permute.xlu0 %796
    %v799 = vmul.f32 %v786, %v797
    %801 = vrot.lane.b32.xlu0 %v799, 64
    %v802 = vpop.permute.xlu0 %801
    %v804 = vadd.f32 %v734, %v802
    %v805 = vtanh.pop %v804
    %v806 = vsub.f32 %v710, %v805
    %808 = vrot.lane.b32.xlu0 %v806, 96
    %v809 = vpop.permute.xlu0 %808
    %v811 = vmul.f32 %v786, %v809
    %813 = vrot.lane.b32.xlu0 %v811, 32
    %v814 = vpop.permute.xlu0 %813
    %v816 = vadd.f32 %v805, %v814
    %v817 = vpack.c.bf16 %v816, %v816
    %v820 = vunpack.c.l.s4 1966171168
    %v821 = vunpack.c.0.s8 %v820
    %v822 = vlaneseq
    %v823 = vshrl.u32 %v822, 7
    %v824 = vsub.s32 %v821, %v823
    %v825 = vrot.slane %v817, %v824
    %v827 = vunpack.c.l.s4 1966171168
    %v828 = vunpack.c.0.s8 %v827
    %v829 = vlaneseq
    %v830 = vshrl.u32 %v829, 7
    %v831 = vsub.s32 %v828, %v830
    %v832 = vrot.slane %v825, %v831
    %833 = vrot.lane.b32.xlu0 %v832, 64
    %v834 = vpop.permute.xlu0 %833
    %s836 = scalar_lea.vmem [#allocation8], 6
    %837 = vst.msk [vmem:[%s836] sm:$0x1] %vm200, %v834
    %s838 = scalar_lea.vmem [#allocation3], 7
    %v839 = vld [vmem:[%s838] sm:$0x1]
    %v840 = vunpack.c.l.bf16 %v839
    %841 = vrot.lane.b32.xlu0 %v817, 64
    %v842 = vpop.permute.xlu0 %841
    %v844 = vsel %vm79, %v842, 0
    %846 = vmatprep.subr.bf16.mxu0 0
    %847 = vmatpush1.bf16.msra.mxu0 0
    %848 = vmatprep.subr.bf16.mxu0 0
    %849 = vmatpush1.bf16.msra.mxu0 0
    %850 = vmatprep.subr.bf16.mxu0 0
    %851 = vmatpush1.bf16.msra.mxu0 0
    %852 = vmatprep.subr.bf16.mxu0 0
    %853 = vmatpush1.bf16.msra.mxu0 0
    %854 = vmatprep.subr.bf16.mxu0 0
    %855 = vmatpush1.bf16.msra.mxu0 0
    %856 = vmatprep.subr.bf16.mxu0 0
    %857 = vmatpush1.bf16.msra.mxu0 0
    %858 = vmatprep.subr.bf16.mxu0 0
    %859 = vmatpush1.bf16.msra.mxu0 %v76
    %860 = vmatprep.subr.bf16.mxu0 0
    %861 = vmatpush1.bf16.msra.mxu0 %v75
    %862 = vmatprep.subr.bf16.mxu0 0
    %863 = vmatpush2.bf16.msra.mxu0 0
    %864 = vmatprep.subr.bf16.mxu0 0
    %865 = vmatpush2.bf16.msra.mxu0 0
    %866 = vmatprep.subr.bf16.mxu0 0
    %867 = vmatpush2.bf16.msra.mxu0 0
    %868 = vmatprep.subr.bf16.mxu0 0
    %869 = vmatpush2.bf16.msra.mxu0 0
    %870 = vmatprep.subr.bf16.mxu0 0
    %871 = vmatpush2.bf16.msra.mxu0 0
    %872 = vmatprep.subr.bf16.mxu0 0
    %873 = vmatpush2.bf16.msra.mxu0 0
    %874 = vmatprep.subr.bf16.mxu0 0
    %875 = vmatpush2.bf16.msra.mxu0 0
    %876 = vmatprep.subr.bf16.mxu0 0
    %877 = vmatpush2.bf16.msra.mxu0 0
    %878 = vmatprep.mubr.bf16.mxu0 0
    %879 = vmatmul.mubr.bf16.gmra.mxu0 %v844
    %v880 = vpop.f32.mrf.mxu0
    %v881 = vadd.f32 0.0, %v880
    %v882 = vpop.f32.mrf.mxu0
    %v883 = vpop.f32.mrf.mxu0
    %v884 = vpop.f32.mrf.mxu0
    %885 = vdwg.mxu0
    %v886 = vadd.f32 %v840, %v881
    %v887 = vxor.u32 %v886, 2147483648
    %v888 = vmul.f32 %v887, 1.442695
    %v889 = vpow.pop %v888
    %v890 = vadd.f32 %v889, 1.0
    %v891 = vrcp.pop %v890
    %v892 = vmul.f32 1.0, %v891
    %v893 = vadd.f32 %v881, %v131
    %v896 = vunpack.c.l.s4 1983009808
    %v897 = vunpack.c.0.s8 %v896
    %v898 = vlaneseq
    %v899 = vshrl.u32 %v898, 7
    %v900 = vsub.s32 %v897, %v899
    %v901 = vrot.slane %v893, %v900
    %902 = vrot.lane.b32.xlu0 %v901, 64
    %v903 = vpop.permute.xlu0 %902
    %v905 = vmul.f32 %v892, %v903
    %907 = vrot.lane.b32.xlu0 %v905, 64
    %v908 = vpop.permute.xlu0 %907
    %v910 = vadd.f32 %v840, %v908
    %v911 = vtanh.pop %v910
    %v912 = vsub.f32 %v816, %v911
    %914 = vrot.lane.b32.xlu0 %v912, 96
    %v915 = vpop.permute.xlu0 %914
    %v917 = vmul.f32 %v892, %v915
    %919 = vrot.lane.b32.xlu0 %v917, 32
    %v920 = vpop.permute.xlu0 %919
    %v922 = vadd.f32 %v911, %v920
    %v923 = vpack.c.bf16 %v922, %v922
    %v926 = vunpack.c.l.s4 1966171168
    %v927 = vunpack.c.0.s8 %v926
    %v928 = vlaneseq
    %v929 = vshrl.u32 %v928, 7
    %v930 = vsub.s32 %v927, %v929
    %v931 = vrot.slane %v923, %v930
    %v933 = vunpack.c.l.s4 1966171168
    %v934 = vunpack.c.0.s8 %v933
    %v935 = vlaneseq
    %v936 = vshrl.u32 %v935, 7
    %v937 = vsub.s32 %v934, %v936
    %v938 = vrot.slane %v931, %v937
    %939 = vrot.lane.b32.xlu0 %v938, 64
    %v940 = vpop.permute.xlu0 %939
    %s942 = scalar_lea.vmem [#allocation8], 7
    %943 = vst.msk [vmem:[%s942] sm:$0x1] %vm200, %v940
    %v946 = vunpack.c.l.s4 1983009808
    %v947 = vunpack.c.0.s8 %v946
    %v948 = vlaneseq
    %v949 = vshrl.u32 %v948, 7
    %v950 = vsub.s32 %v947, %v949
    %v951 = vrot.slane %v922, %v950
    %952 = vrot.lane.b32.xlu0 %v951, 64
    %v953 = vpop.permute.xlu0 %952
    %vm955 = vcmask 254976
    %956 = vst.msk [vmem:[#allocation2] sm:$0x3] %vm955, %v953
    %957 = vst.msk [vmem:[#allocation9] sm:$0x3] %vm955, %v953
    // Predicated region
    $region26: #{tpu_custom_call.1} parent=1 // pred_check
      _
    $region27: #{tpu_custom_call.1} parent=1 // pred_check_branch
      %959 = sbr.rel (0) target = $region29
    $region28: #{tpu_custom_call.1} parent=1 // pred_region
      %s961 = ssub.s32 128, 128
      %962 = vsyncadd [#allocation5], %s961
      %s963 = sshll.u32 [#allocation8], 4
      %s964 = int_to_ptr.vmem [resolvable:$true] %s963
      %969 = dma.vmem_to_hbm [thread:$0]  %s964, 128, %s3, [#allocation5], 16, 16, 1
    $region29: #{tpu_custom_call.1} parent=1 // pred_fallthru
      _
    // Predicated region
    $region30: #{tpu_custom_call.1} parent=1 // pred_check
      _
    $region31: #{tpu_custom_call.1} parent=1 // pred_check_branch
      %971 = sbr.rel (0) target = $region33
    $region32: #{tpu_custom_call.1} parent=1 // pred_region
      %s973 = ssub.s32 32, 32
      %974 = vsyncadd [#allocation10], %s973
      %s976 = sshll.u32 [#allocation9], 4
      %s977 = int_to_ptr.vmem [resolvable:$true] %s976
      %979 = dma.vmem_to_hbm [thread:$0]  %s977, 32, %s4, [#allocation10]
    $region33: #{tpu_custom_call.1} parent=1 // pred_fallthru
      _
    // Predicated region
    $region34: #{tpu_custom_call.1} parent=1 // pred_check
      _
    $region35: #{tpu_custom_call.1} parent=1 // pred_check_branch
      %981 = sbr.rel (0) target = $region37
    $region36: #{tpu_custom_call.1} parent=1 // pred_region
      %982 = dma.done [#allocation5], 128
    $region37: #{tpu_custom_call.1} parent=1 // pred_fallthru
      _
    // Predicated region
    $region38: #{tpu_custom_call.1} parent=1 // pred_check
      _
    $region39: #{tpu_custom_call.1} parent=1 // pred_check_branch
      %984 = sbr.rel (0) target = $region41
    $region40: #{tpu_custom_call.1} parent=1 // pred_region
      %985 = dma.done [#allocation10], 32
    $region41: #{tpu_custom_call.1} parent=1 // pred_fallthru
      _
    %986 = vsyncpa [#allocation4], 1
    %987 = vsyncpa [#allocation7], 1
    %988 = vsyncpa [#allocation5], 1
    %989 = vsyncpa [#allocation10], 1

</llo_original>
